<compile_context>
chip_gen: v6e
topology: v6e:2x2x1
jax: 0.10.0
libtpu: 0.0.40
codegen_flags: <defaults>
</compile_context>

<pallas_src>
import jax
import jax.numpy as jnp
from jax.experimental import pallas as pl
from jax.experimental.pallas import tpu as pltpu


def _make_kernel(d_in, c1, c2, k, l_out):
    """Build the kernel with static layer sizes closed over as Python ints."""

    def kernel(x_ref, w1_ref, b1_ref, w2_ref, b2_ref, w3_ref, b3_ref, o_ref):
        # x_ref : (d_in, L, TB)   VMEM   one batch tile, batch on the lane axis
        # w1_ref: (c1*d_in*k,)    SMEM   flat, index [(co*d_in + ci)*k + tap]
        # b1_ref: (c1,)           SMEM
        # w2_ref: (c2*c1,)        SMEM   flat, index [co*c1 + ci]
        # b2_ref: (c2,)           SMEM
        # w3_ref: (c2,)           SMEM
        # b3_ref: (1,)            SMEM
        # o_ref : (l_out, TB)     VMEM   lane-dense output tile
        tb = o_ref.shape[1]

        # Load each input channel once, cast to f32 after load, and hoist the
        # per-tap shifted time windows out of the output-channel loop.
        xs = [x_ref[ci].astype(jnp.float32) for ci in range(d_in)]          # (L, TB)
        xsl = [[xs[ci][tap:tap + l_out, :] for tap in range(k)]             # (l_out, TB)
               for ci in range(d_in)]

        # --- Layer 1: Conv1d(d_in -> c1, kernel_size=k), ReLU  (VPU broadcast-FMA) ---
        h1 = []
        for co in range(c1):
            acc = jnp.full((l_out, tb), b1_ref[co], jnp.float32)
            for ci in range(d_in):
                for tap in range(k):
                    acc = acc + w1_ref[(co * d_in + ci) * k + tap] * xsl[ci][tap]
            h1.append(jnp.maximum(acc, 0.0))

        # --- Layer 2: Conv1d(c1 -> c2, kernel_size=1), ReLU ---
        h2 = []
        for co in range(c2):
            acc = jnp.full((l_out, tb), b2_ref[co], jnp.float32)
            for ci in range(c1):
                acc = acc + w2_ref[co * c1 + ci] * h1[ci]
            h2.append(jnp.maximum(acc, 0.0))

        # --- Layer 3: Conv1d(c2 -> 1, kernel_size=1): weighted sum of hidden planes ---
        out = jnp.full((l_out, tb), b3_ref[0], jnp.float32)
        for ci in range(c2):
            out = out + w3_ref[ci] * h2[ci]

        o_ref[...] = out.astype(o_ref.dtype)

    return kernel


def discriminator_forward(data, params, *, tb=128):
    """data: (B, L, d_in) -- same layout the PyTorch forward receives.

    Returns (B, 1, L - k + 1), matching Discriminator.forward.
    """
    w1, b1, w2, b2, w3, b3 = params                     # torch-layout parameters
    B, L, d_in = data.shape
    c1, _, k = w1.shape
    c2 = w2.shape[0]
    L_out = L - k + 1

    # Glue (plain JAX): layout change (batch -> lane axis) + weight flattening.
    # NOTE: activations keep their original dtype (no f32 upcast before the DMA).
    x = jnp.transpose(data, (2, 1, 0))                  # (d_in, L, B)
    B_pad = ((B + tb - 1) // tb) * tb
    if B_pad != B:
        x = jnp.pad(x, ((0, 0), (0, 0), (0, B_pad - B)))

    w1f = w1.reshape(-1).astype(jnp.float32)            # (c1*d_in*k,)
    b1f = b1.reshape(-1).astype(jnp.float32)            # (c1,)
    w2f = w2[:, :, 0].reshape(-1).astype(jnp.float32)   # (c2*c1,)
    b2f = b2.reshape(-1).astype(jnp.float32)            # (c2,)
    w3f = w3[0, :, 0].reshape(-1).astype(jnp.float32)   # (c2,)
    b3f = b3.reshape(-1).astype(jnp.float32)            # (1,)

    kernel = _make_kernel(d_in, c1, c2, k, L_out)
    smem_spec = lambda: pl.BlockSpec(memory_space=pltpu.MemorySpace.SMEM)

    out_pad = pl.pallas_call(
        kernel,
        out_shape=jax.ShapeDtypeStruct((L_out, B_pad), data.dtype),
        grid_spec=pltpu.PrefetchScalarGridSpec(
            num_scalar_prefetch=0,
            grid=(B_pad // tb,),
            in_specs=[
                pl.BlockSpec((d_in, L, tb), lambda b: (0, 0, b)),
                smem_spec(), smem_spec(), smem_spec(),
                smem_spec(), smem_spec(), smem_spec(),
            ],
            out_specs=pl.BlockSpec((L_out, tb), lambda b: (0, b)),
        ),
        compiler_params=pltpu.CompilerParams(
            dimension_semantics=("parallel",)),
    )(x, w1f, b1f, w2f, b2f, w3f, b3f)

    # (L_out, B_pad) -> (B, 1, L_out), dropping batch padding.
    return jnp.transpose(out_pad[:, :B], (1, 0))[:, None, :]


def reference_forward(data, params):
    """Pure-JAX reference mirroring the PyTorch forward exactly."""
    w1, b1, w2, b2, w3, b3 = params
    x = jnp.transpose(data, (0, 2, 1))                  # (B, d_in, L)
    k = w1.shape[2]
    L_out = x.shape[2] - k + 1
    h1 = b1[None, :, None]
    for tap in range(k):
        h1 = h1 + jnp.einsum('oi,bit->bot', w1[:, :, tap], x[:, :, tap:tap + L_out])
    h1 = jnp.maximum(h1, 0.0)
    h2 = jnp.maximum(jnp.einsum('oi,bit->bot', w2[:, :, 0], h1) + b2[None, :, None], 0.0)
    return jnp.einsum('oi,bit->bot', w3[:, :, 0], h2) + b3[None, :, None]


if __name__ == "__main__":
    # config: d_in=4, d_conv1=8, d_conv2=8, kernel_size=3
    B, L, d_in = 2, 16, 4
    c1, c2, k = 8, 8, 3

    key = jax.random.PRNGKey(0)
    keys = jax.random.split(key, 7)
    data = jax.random.normal(keys[0], (B, L, d_in), jnp.float32)

    # Deterministic synthetic parameters in PyTorch Conv1d layout (C_out, C_in, K).
    w1 = jax.random.normal(keys[1], (c1, d_in, k), jnp.float32) * 0.2
    b1 = jax.random.normal(keys[2], (c1,), jnp.float32) * 0.1
    w2 = jax.random.normal(keys[3], (c2, c1, 1), jnp.float32) * 0.2
    b2 = jax.random.normal(keys[4], (c2,), jnp.float32) * 0.1
    w3 = jax.random.normal(keys[5], (1, c2, 1), jnp.float32) * 0.2
    b3 = jax.random.normal(keys[6], (1,), jnp.float32) * 0.1
    params = (w1, b1, w2, b2, w3, b3)

    out = discriminator_forward(data, params)
    out = jax.block_until_ready(out)

    ref = reference_forward(data, params)
    assert out.shape == (B, 1, L - k + 1), out.shape
    assert jnp.allclose(out, ref, atol=1e-5, rtol=1e-5), "mismatch vs reference"

    print("KERNEL_OK")
</pallas_src>

<mosaic_0001>
module attributes {stable_mosaic.version = 11 : i64} {
  func.func @kernel(%arg0: i32, %arg1: memref<4x16x128xf32, #tpu.memory_space<vmem>>, %arg2: memref<96xf32, #tpu.memory_space<smem>>, %arg3: memref<8xf32, #tpu.memory_space<smem>>, %arg4: memref<64xf32, #tpu.memory_space<smem>>, %arg5: memref<8xf32, #tpu.memory_space<smem>>, %arg6: memref<8xf32, #tpu.memory_space<smem>>, %arg7: memref<1xf32, #tpu.memory_space<smem>>, %arg8: memref<14x128xf32, #tpu.memory_space<vmem>>) attributes {dimension_semantics = [#tpu.dimension_semantics<parallel>], iteration_bounds = array<i64: 1>, scalar_prefetch = 0 : i64, scratch_operands = 0 : i64, tpu.core_type = #tpu.core_type<tc>, window_params = [{transform_indices = @transform_0, window_bounds = array<i64: 4, 16, 128>}, {transform_indices = @transform_1, window_bounds = array<i64: 96>}, {transform_indices = @transform_2, window_bounds = array<i64: 8>}, {transform_indices = @transform_3, window_bounds = array<i64: 64>}, {transform_indices = @transform_4, window_bounds = array<i64: 8>}, {transform_indices = @transform_5, window_bounds = array<i64: 8>}, {transform_indices = @transform_6, window_bounds = array<i64: 1>}, {transform_indices = @transform_7, window_bounds = array<i64: 14, 128>}]} {
    %c0 = arith.constant 0 : index
    %c0_0 = arith.constant 0 : index
    %c0_1 = arith.constant 0 : index
    %0 = vector.load %arg1[%c0, %c0_0, %c0_1] : memref<4x16x128xf32, #tpu.memory_space<vmem>>, vector<1x16x128xf32>
    %1 = vector.shape_cast %0 : vector<1x16x128xf32> to vector<16x128xf32>
    %c1 = arith.constant 1 : index
    %c0_2 = arith.constant 0 : index
    %c0_3 = arith.constant 0 : index
    %2 = vector.load %arg1[%c1, %c0_2, %c0_3] : memref<4x16x128xf32, #tpu.memory_space<vmem>>, vector<1x16x128xf32>
    %3 = vector.shape_cast %2 : vector<1x16x128xf32> to vector<16x128xf32>
    %c2 = arith.constant 2 : index
    %c0_4 = arith.constant 0 : index
    %c0_5 = arith.constant 0 : index
    %4 = vector.load %arg1[%c2, %c0_4, %c0_5] : memref<4x16x128xf32, #tpu.memory_space<vmem>>, vector<1x16x128xf32>
    %5 = vector.shape_cast %4 : vector<1x16x128xf32> to vector<16x128xf32>
    %c3 = arith.constant 3 : index
    %c0_6 = arith.constant 0 : index
    %c0_7 = arith.constant 0 : index
    %6 = vector.load %arg1[%c3, %c0_6, %c0_7] : memref<4x16x128xf32, #tpu.memory_space<vmem>>, vector<1x16x128xf32>
    %7 = vector.shape_cast %6 : vector<1x16x128xf32> to vector<16x128xf32>
    %8 = vector.extract_strided_slice %1 {offsets = [0, 0], sizes = [14, 128], strides = [1, 1]} : vector<16x128xf32> to vector<14x128xf32>
    %9 = vector.extract_strided_slice %1 {offsets = [1, 0], sizes = [14, 128], strides = [1, 1]} : vector<16x128xf32> to vector<14x128xf32>
    %10 = vector.extract_strided_slice %1 {offsets = [2, 0], sizes = [14, 128], strides = [1, 1]} : vector<16x128xf32> to vector<14x128xf32>
    %11 = vector.extract_strided_slice %3 {offsets = [0, 0], sizes = [14, 128], strides = [1, 1]} : vector<16x128xf32> to vector<14x128xf32>
    %12 = vector.extract_strided_slice %3 {offsets = [1, 0], sizes = [14, 128], strides = [1, 1]} : vector<16x128xf32> to vector<14x128xf32>
    %13 = vector.extract_strided_slice %3 {offsets = [2, 0], sizes = [14, 128], strides = [1, 1]} : vector<16x128xf32> to vector<14x128xf32>
    %14 = vector.extract_strided_slice %5 {offsets = [0, 0], sizes = [14, 128], strides = [1, 1]} : vector<16x128xf32> to vector<14x128xf32>
    %15 = vector.extract_strided_slice %5 {offsets = [1, 0], sizes = [14, 128], strides = [1, 1]} : vector<16x128xf32> to vector<14x128xf32>
    %16 = vector.extract_strided_slice %5 {offsets = [2, 0], sizes = [14, 128], strides = [1, 1]} : vector<16x128xf32> to vector<14x128xf32>
    %17 = vector.extract_strided_slice %7 {offsets = [0, 0], sizes = [14, 128], strides = [1, 1]} : vector<16x128xf32> to vector<14x128xf32>
    %18 = vector.extract_strided_slice %7 {offsets = [1, 0], sizes = [14, 128], strides = [1, 1]} : vector<16x128xf32> to vector<14x128xf32>
    %19 = vector.extract_strided_slice %7 {offsets = [2, 0], sizes = [14, 128], strides = [1, 1]} : vector<16x128xf32> to vector<14x128xf32>
    %c0_8 = arith.constant 0 : index
    %20 = memref.load %arg3[%c0_8] : memref<8xf32, #tpu.memory_space<smem>>
    %21 = vector.broadcast %20 : f32 to vector<14x128xf32>
    %c0_9 = arith.constant 0 : index
    %22 = memref.load %arg2[%c0_9] : memref<96xf32, #tpu.memory_space<smem>>
    %23 = vector.broadcast %22 : f32 to vector<14x128xf32>
    %24 = arith.mulf %23, %8 : vector<14x128xf32>
    %25 = arith.addf %21, %24 : vector<14x128xf32>
    %c1_10 = arith.constant 1 : index
    %26 = memref.load %arg2[%c1_10] : memref<96xf32, #tpu.memory_space<smem>>
    %27 = vector.broadcast %26 : f32 to vector<14x128xf32>
    %28 = arith.mulf %27, %9 : vector<14x128xf32>
    %29 = arith.addf %25, %28 : vector<14x128xf32>
    %c2_11 = arith.constant 2 : index
    %30 = memref.load %arg2[%c2_11] : memref<96xf32, #tpu.memory_space<smem>>
    %31 = vector.broadcast %30 : f32 to vector<14x128xf32>
    %32 = arith.mulf %31, %10 : vector<14x128xf32>
    %33 = arith.addf %29, %32 : vector<14x128xf32>
    %c3_12 = arith.constant 3 : index
    %34 = memref.load %arg2[%c3_12] : memref<96xf32, #tpu.memory_space<smem>>
    %35 = vector.broadcast %34 : f32 to vector<14x128xf32>
    %36 = arith.mulf %35, %11 : vector<14x128xf32>
    %37 = arith.addf %33, %36 : vector<14x128xf32>
    %c4 = arith.constant 4 : index
    %38 = memref.load %arg2[%c4] : memref<96xf32, #tpu.memory_space<smem>>
    %39 = vector.broadcast %38 : f32 to vector<14x128xf32>
    %40 = arith.mulf %39, %12 : vector<14x128xf32>
    %41 = arith.addf %37, %40 : vector<14x128xf32>
    %c5 = arith.constant 5 : index
    %42 = memref.load %arg2[%c5] : memref<96xf32, #tpu.memory_space<smem>>
    %43 = vector.broadcast %42 : f32 to vector<14x128xf32>
    %44 = arith.mulf %43, %13 : vector<14x128xf32>
    %45 = arith.addf %41, %44 : vector<14x128xf32>
    %c6 = arith.constant 6 : index
    %46 = memref.load %arg2[%c6] : memref<96xf32, #tpu.memory_space<smem>>
    %47 = vector.broadcast %46 : f32 to vector<14x128xf32>
    %48 = arith.mulf %47, %14 : vector<14x128xf32>
    %49 = arith.addf %45, %48 : vector<14x128xf32>
    %c7 = arith.constant 7 : index
    %50 = memref.load %arg2[%c7] : memref<96xf32, #tpu.memory_space<smem>>
    %51 = vector.broadcast %50 : f32 to vector<14x128xf32>
    %52 = arith.mulf %51, %15 : vector<14x128xf32>
    %53 = arith.addf %49, %52 : vector<14x128xf32>
    %c8 = arith.constant 8 : index
    %54 = memref.load %arg2[%c8] : memref<96xf32, #tpu.memory_space<smem>>
    %55 = vector.broadcast %54 : f32 to vector<14x128xf32>
    %56 = arith.mulf %55, %16 : vector<14x128xf32>
    %57 = arith.addf %53, %56 : vector<14x128xf32>
    %c9 = arith.constant 9 : index
    %58 = memref.load %arg2[%c9] : memref<96xf32, #tpu.memory_space<smem>>
    %59 = vector.broadcast %58 : f32 to vector<14x128xf32>
    %60 = arith.mulf %59, %17 : vector<14x128xf32>
    %61 = arith.addf %57, %60 : vector<14x128xf32>
    %c10 = arith.constant 10 : index
    %62 = memref.load %arg2[%c10] : memref<96xf32, #tpu.memory_space<smem>>
    %63 = vector.broadcast %62 : f32 to vector<14x128xf32>
    %64 = arith.mulf %63, %18 : vector<14x128xf32>
    %65 = arith.addf %61, %64 : vector<14x128xf32>
    %c11 = arith.constant 11 : index
    %66 = memref.load %arg2[%c11] : memref<96xf32, #tpu.memory_space<smem>>
    %67 = vector.broadcast %66 : f32 to vector<14x128xf32>
    %68 = arith.mulf %67, %19 : vector<14x128xf32>
    %69 = arith.addf %65, %68 : vector<14x128xf32>
    %cst = arith.constant 0.000000e+00 : f32
    %70 = vector.broadcast %cst : f32 to vector<14x128xf32>
    %71 = arith.maximumf %69, %70 : vector<14x128xf32>
    %c1_13 = arith.constant 1 : index
    %72 = memref.load %arg3[%c1_13] : memref<8xf32, #tpu.memory_space<smem>>
    %73 = vector.broadcast %72 : f32 to vector<14x128xf32>
    %c12 = arith.constant 12 : index
    %74 = memref.load %arg2[%c12] : memref<96xf32, #tpu.memory_space<smem>>
    %75 = vector.broadcast %74 : f32 to vector<14x128xf32>
    %76 = arith.mulf %75, %8 : vector<14x128xf32>
    %77 = arith.addf %73, %76 : vector<14x128xf32>
    %c13 = arith.constant 13 : index
    %78 = memref.load %arg2[%c13] : memref<96xf32, #tpu.memory_space<smem>>
    %79 = vector.broadcast %78 : f32 to vector<14x128xf32>
    %80 = arith.mulf %79, %9 : vector<14x128xf32>
    %81 = arith.addf %77, %80 : vector<14x128xf32>
    %c14 = arith.constant 14 : index
    %82 = memref.load %arg2[%c14] : memref<96xf32, #tpu.memory_space<smem>>
    %83 = vector.broadcast %82 : f32 to vector<14x128xf32>
    %84 = arith.mulf %83, %10 : vector<14x128xf32>
    %85 = arith.addf %81, %84 : vector<14x128xf32>
    %c15 = arith.constant 15 : index
    %86 = memref.load %arg2[%c15] : memref<96xf32, #tpu.memory_space<smem>>
    %87 = vector.broadcast %86 : f32 to vector<14x128xf32>
    %88 = arith.mulf %87, %11 : vector<14x128xf32>
    %89 = arith.addf %85, %88 : vector<14x128xf32>
    %c16 = arith.constant 16 : index
    %90 = memref.load %arg2[%c16] : memref<96xf32, #tpu.memory_space<smem>>
    %91 = vector.broadcast %90 : f32 to vector<14x128xf32>
    %92 = arith.mulf %91, %12 : vector<14x128xf32>
    %93 = arith.addf %89, %92 : vector<14x128xf32>
    %c17 = arith.constant 17 : index
    %94 = memref.load %arg2[%c17] : memref<96xf32, #tpu.memory_space<smem>>
    %95 = vector.broadcast %94 : f32 to vector<14x128xf32>
    %96 = arith.mulf %95, %13 : vector<14x128xf32>
    %97 = arith.addf %93, %96 : vector<14x128xf32>
    %c18 = arith.constant 18 : index
    %98 = memref.load %arg2[%c18] : memref<96xf32, #tpu.memory_space<smem>>
    %99 = vector.broadcast %98 : f32 to vector<14x128xf32>
    %100 = arith.mulf %99, %14 : vector<14x128xf32>
    %101 = arith.addf %97, %100 : vector<14x128xf32>
    %c19 = arith.constant 19 : index
    %102 = memref.load %arg2[%c19] : memref<96xf32, #tpu.memory_space<smem>>
    %103 = vector.broadcast %102 : f32 to vector<14x128xf32>
    %104 = arith.mulf %103, %15 : vector<14x128xf32>
    %105 = arith.addf %101, %104 : vector<14x128xf32>
    %c20 = arith.constant 20 : index
    %106 = memref.load %arg2[%c20] : memref<96xf32, #tpu.memory_space<smem>>
    %107 = vector.broadcast %106 : f32 to vector<14x128xf32>
    %108 = arith.mulf %107, %16 : vector<14x128xf32>
    %109 = arith.addf %105, %108 : vector<14x128xf32>
    %c21 = arith.constant 21 : index
    %110 = memref.load %arg2[%c21] : memref<96xf32, #tpu.memory_space<smem>>
    %111 = vector.broadcast %110 : f32 to vector<14x128xf32>
    %112 = arith.mulf %111, %17 : vector<14x128xf32>
    %113 = arith.addf %109, %112 : vector<14x128xf32>
    %c22 = arith.constant 22 : index
    %114 = memref.load %arg2[%c22] : memref<96xf32, #tpu.memory_space<smem>>
    %115 = vector.broadcast %114 : f32 to vector<14x128xf32>
    %116 = arith.mulf %115, %18 : vector<14x128xf32>
    %117 = arith.addf %113, %116 : vector<14x128xf32>
    %c23 = arith.constant 23 : index
    %118 = memref.load %arg2[%c23] : memref<96xf32, #tpu.memory_space<smem>>
    %119 = vector.broadcast %118 : f32 to vector<14x128xf32>
    %120 = arith.mulf %119, %19 : vector<14x128xf32>
    %121 = arith.addf %117, %120 : vector<14x128xf32>
    %cst_14 = arith.constant 0.000000e+00 : f32
    %122 = vector.broadcast %cst_14 : f32 to vector<14x128xf32>
    %123 = arith.maximumf %121, %122 : vector<14x128xf32>
    %c2_15 = arith.constant 2 : index
    %124 = memref.load %arg3[%c2_15] : memref<8xf32, #tpu.memory_space<smem>>
    %125 = vector.broadcast %124 : f32 to vector<14x128xf32>
    %c24 = arith.constant 24 : index
    %126 = memref.load %arg2[%c24] : memref<96xf32, #tpu.memory_space<smem>>
    %127 = vector.broadcast %126 : f32 to vector<14x128xf32>
    %128 = arith.mulf %127, %8 : vector<14x128xf32>
    %129 = arith.addf %125, %128 : vector<14x128xf32>
    %c25 = arith.constant 25 : index
    %130 = memref.load %arg2[%c25] : memref<96xf32, #tpu.memory_space<smem>>
    %131 = vector.broadcast %130 : f32 to vector<14x128xf32>
    %132 = arith.mulf %131, %9 : vector<14x128xf32>
    %133 = arith.addf %129, %132 : vector<14x128xf32>
    %c26 = arith.constant 26 : index
    %134 = memref.load %arg2[%c26] : memref<96xf32, #tpu.memory_space<smem>>
    %135 = vector.broadcast %134 : f32 to vector<14x128xf32>
    %136 = arith.mulf %135, %10 : vector<14x128xf32>
    %137 = arith.addf %133, %136 : vector<14x128xf32>
    %c27 = arith.constant 27 : index
    %138 = memref.load %arg2[%c27] : memref<96xf32, #tpu.memory_space<smem>>
    %139 = vector.broadcast %138 : f32 to vector<14x128xf32>
    %140 = arith.mulf %139, %11 : vector<14x128xf32>
    %141 = arith.addf %137, %140 : vector<14x128xf32>
    %c28 = arith.constant 28 : index
    %142 = memref.load %arg2[%c28] : memref<96xf32, #tpu.memory_space<smem>>
    %143 = vector.broadcast %142 : f32 to vector<14x128xf32>
    %144 = arith.mulf %143, %12 : vector<14x128xf32>
    %145 = arith.addf %141, %144 : vector<14x128xf32>
    %c29 = arith.constant 29 : index
    %146 = memref.load %arg2[%c29] : memref<96xf32, #tpu.memory_space<smem>>
    %147 = vector.broadcast %146 : f32 to vector<14x128xf32>
    %148 = arith.mulf %147, %13 : vector<14x128xf32>
    %149 = arith.addf %145, %148 : vector<14x128xf32>
    %c30 = arith.constant 30 : index
    %150 = memref.load %arg2[%c30] : memref<96xf32, #tpu.memory_space<smem>>
    %151 = vector.broadcast %150 : f32 to vector<14x128xf32>
    %152 = arith.mulf %151, %14 : vector<14x128xf32>
    %153 = arith.addf %149, %152 : vector<14x128xf32>
    %c31 = arith.constant 31 : index
    %154 = memref.load %arg2[%c31] : memref<96xf32, #tpu.memory_space<smem>>
    %155 = vector.broadcast %154 : f32 to vector<14x128xf32>
    %156 = arith.mulf %155, %15 : vector<14x128xf32>
    %157 = arith.addf %153, %156 : vector<14x128xf32>
    %c32 = arith.constant 32 : index
    %158 = memref.load %arg2[%c32] : memref<96xf32, #tpu.memory_space<smem>>
    %159 = vector.broadcast %158 : f32 to vector<14x128xf32>
    %160 = arith.mulf %159, %16 : vector<14x128xf32>
    %161 = arith.addf %157, %160 : vector<14x128xf32>
    %c33 = arith.constant 33 : index
    %162 = memref.load %arg2[%c33] : memref<96xf32, #tpu.memory_space<smem>>
    %163 = vector.broadcast %162 : f32 to vector<14x128xf32>
    %164 = arith.mulf %163, %17 : vector<14x128xf32>
    %165 = arith.addf %161, %164 : vector<14x128xf32>
    %c34 = arith.constant 34 : index
    %166 = memref.load %arg2[%c34] : memref<96xf32, #tpu.memory_space<smem>>
    %167 = vector.broadcast %166 : f32 to vector<14x128xf32>
    %168 = arith.mulf %167, %18 : vector<14x128xf32>
    %169 = arith.addf %165, %168 : vector<14x128xf32>
    %c35 = arith.constant 35 : index
    %170 = memref.load %arg2[%c35] : memref<96xf32, #tpu.memory_space<smem>>
    %171 = vector.broadcast %170 : f32 to vector<14x128xf32>
    %172 = arith.mulf %171, %19 : vector<14x128xf32>
    %173 = arith.addf %169, %172 : vector<14x128xf32>
    %cst_16 = arith.constant 0.000000e+00 : f32
    %174 = vector.broadcast %cst_16 : f32 to vector<14x128xf32>
    %175 = arith.maximumf %173, %174 : vector<14x128xf32>
    %c3_17 = arith.constant 3 : index
    %176 = memref.load %arg3[%c3_17] : memref<8xf32, #tpu.memory_space<smem>>
    %177 = vector.broadcast %176 : f32 to vector<14x128xf32>
    %c36 = arith.constant 36 : index
    %178 = memref.load %arg2[%c36] : memref<96xf32, #tpu.memory_space<smem>>
    %179 = vector.broadcast %178 : f32 to vector<14x128xf32>
    %180 = arith.mulf %179, %8 : vector<14x128xf32>
    %181 = arith.addf %177, %180 : vector<14x128xf32>
    %c37 = arith.constant 37 : index
    %182 = memref.load %arg2[%c37] : memref<96xf32, #tpu.memory_space<smem>>
    %183 = vector.broadcast %182 : f32 to vector<14x128xf32>
    %184 = arith.mulf %183, %9 : vector<14x128xf32>
    %185 = arith.addf %181, %184 : vector<14x128xf32>
    %c38 = arith.constant 38 : index
    %186 = memref.load %arg2[%c38] : memref<96xf32, #tpu.memory_space<smem>>
    %187 = vector.broadcast %186 : f32 to vector<14x128xf32>
    %188 = arith.mulf %187, %10 : vector<14x128xf32>
    %189 = arith.addf %185, %188 : vector<14x128xf32>
    %c39 = arith.constant 39 : index
    %190 = memref.load %arg2[%c39] : memref<96xf32, #tpu.memory_space<smem>>
    %191 = vector.broadcast %190 : f32 to vector<14x128xf32>
    %192 = arith.mulf %191, %11 : vector<14x128xf32>
    %193 = arith.addf %189, %192 : vector<14x128xf32>
    %c40 = arith.constant 40 : index
    %194 = memref.load %arg2[%c40] : memref<96xf32, #tpu.memory_space<smem>>
    %195 = vector.broadcast %194 : f32 to vector<14x128xf32>
    %196 = arith.mulf %195, %12 : vector<14x128xf32>
    %197 = arith.addf %193, %196 : vector<14x128xf32>
    %c41 = arith.constant 41 : index
    %198 = memref.load %arg2[%c41] : memref<96xf32, #tpu.memory_space<smem>>
    %199 = vector.broadcast %198 : f32 to vector<14x128xf32>
    %200 = arith.mulf %199, %13 : vector<14x128xf32>
    %201 = arith.addf %197, %200 : vector<14x128xf32>
    %c42 = arith.constant 42 : index
    %202 = memref.load %arg2[%c42] : memref<96xf32, #tpu.memory_space<smem>>
    %203 = vector.broadcast %202 : f32 to vector<14x128xf32>
    %204 = arith.mulf %203, %14 : vector<14x128xf32>
    %205 = arith.addf %201, %204 : vector<14x128xf32>
    %c43 = arith.constant 43 : index
    %206 = memref.load %arg2[%c43] : memref<96xf32, #tpu.memory_space<smem>>
    %207 = vector.broadcast %206 : f32 to vector<14x128xf32>
    %208 = arith.mulf %207, %15 : vector<14x128xf32>
    %209 = arith.addf %205, %208 : vector<14x128xf32>
    %c44 = arith.constant 44 : index
    %210 = memref.load %arg2[%c44] : memref<96xf32, #tpu.memory_space<smem>>
    %211 = vector.broadcast %210 : f32 to vector<14x128xf32>
    %212 = arith.mulf %211, %16 : vector<14x128xf32>
    %213 = arith.addf %209, %212 : vector<14x128xf32>
    %c45 = arith.constant 45 : index
    %214 = memref.load %arg2[%c45] : memref<96xf32, #tpu.memory_space<smem>>
    %215 = vector.broadcast %214 : f32 to vector<14x128xf32>
    %216 = arith.mulf %215, %17 : vector<14x128xf32>
    %217 = arith.addf %213, %216 : vector<14x128xf32>
    %c46 = arith.constant 46 : index
    %218 = memref.load %arg2[%c46] : memref<96xf32, #tpu.memory_space<smem>>
    %219 = vector.broadcast %218 : f32 to vector<14x128xf32>
    %220 = arith.mulf %219, %18 : vector<14x128xf32>
    %221 = arith.addf %217, %220 : vector<14x128xf32>
    %c47 = arith.constant 47 : index
    %222 = memref.load %arg2[%c47] : memref<96xf32, #tpu.memory_space<smem>>
    %223 = vector.broadcast %222 : f32 to vector<14x128xf32>
    %224 = arith.mulf %223, %19 : vector<14x128xf32>
    %225 = arith.addf %221, %224 : vector<14x128xf32>
    %cst_18 = arith.constant 0.000000e+00 : f32
    %226 = vector.broadcast %cst_18 : f32 to vector<14x128xf32>
    %227 = arith.maximumf %225, %226 : vector<14x128xf32>
    %c4_19 = arith.constant 4 : index
    %228 = memref.load %arg3[%c4_19] : memref<8xf32, #tpu.memory_space<smem>>
    %229 = vector.broadcast %228 : f32 to vector<14x128xf32>
    %c48 = arith.constant 48 : index
    %230 = memref.load %arg2[%c48] : memref<96xf32, #tpu.memory_space<smem>>
    %231 = vector.broadcast %230 : f32 to vector<14x128xf32>
    %232 = arith.mulf %231, %8 : vector<14x128xf32>
    %233 = arith.addf %229, %232 : vector<14x128xf32>
    %c49 = arith.constant 49 : index
    %234 = memref.load %arg2[%c49] : memref<96xf32, #tpu.memory_space<smem>>
    %235 = vector.broadcast %234 : f32 to vector<14x128xf32>
    %236 = arith.mulf %235, %9 : vector<14x128xf32>
    %237 = arith.addf %233, %236 : vector<14x128xf32>
    %c50 = arith.constant 50 : index
    %238 = memref.load %arg2[%c50] : memref<96xf32, #tpu.memory_space<smem>>
    %239 = vector.broadcast %238 : f32 to vector<14x128xf32>
    %240 = arith.mulf %239, %10 : vector<14x128xf32>
    %241 = arith.addf %237, %240 : vector<14x128xf32>
    %c51 = arith.constant 51 : index
    %242 = memref.load %arg2[%c51] : memref<96xf32, #tpu.memory_space<smem>>
    %243 = vector.broadcast %242 : f32 to vector<14x128xf32>
    %244 = arith.mulf %243, %11 : vector<14x128xf32>
    %245 = arith.addf %241, %244 : vector<14x128xf32>
    %c52 = arith.constant 52 : index
    %246 = memref.load %arg2[%c52] : memref<96xf32, #tpu.memory_space<smem>>
    %247 = vector.broadcast %246 : f32 to vector<14x128xf32>
    %248 = arith.mulf %247, %12 : vector<14x128xf32>
    %249 = arith.addf %245, %248 : vector<14x128xf32>
    %c53 = arith.constant 53 : index
    %250 = memref.load %arg2[%c53] : memref<96xf32, #tpu.memory_space<smem>>
    %251 = vector.broadcast %250 : f32 to vector<14x128xf32>
    %252 = arith.mulf %251, %13 : vector<14x128xf32>
    %253 = arith.addf %249, %252 : vector<14x128xf32>
    %c54 = arith.constant 54 : index
    %254 = memref.load %arg2[%c54] : memref<96xf32, #tpu.memory_space<smem>>
    %255 = vector.broadcast %254 : f32 to vector<14x128xf32>
    %256 = arith.mulf %255, %14 : vector<14x128xf32>
    %257 = arith.addf %253, %256 : vector<14x128xf32>
    %c55 = arith.constant 55 : index
    %258 = memref.load %arg2[%c55] : memref<96xf32, #tpu.memory_space<smem>>
    %259 = vector.broadcast %258 : f32 to vector<14x128xf32>
    %260 = arith.mulf %259, %15 : vector<14x128xf32>
    %261 = arith.addf %257, %260 : vector<14x128xf32>
    %c56 = arith.constant 56 : index
    %262 = memref.load %arg2[%c56] : memref<96xf32, #tpu.memory_space<smem>>
    %263 = vector.broadcast %262 : f32 to vector<14x128xf32>
    %264 = arith.mulf %263, %16 : vector<14x128xf32>
    %265 = arith.addf %261, %264 : vector<14x128xf32>
    %c57 = arith.constant 57 : index
    %266 = memref.load %arg2[%c57] : memref<96xf32, #tpu.memory_space<smem>>
    %267 = vector.broadcast %266 : f32 to vector<14x128xf32>
    %268 = arith.mulf %267, %17 : vector<14x128xf32>
    %269 = arith.addf %265, %268 : vector<14x128xf32>
    %c58 = arith.constant 58 : index
    %270 = memref.load %arg2[%c58] : memref<96xf32, #tpu.memory_space<smem>>
    %271 = vector.broadcast %270 : f32 to vector<14x128xf32>
    %272 = arith.mulf %271, %18 : vector<14x128xf32>
    %273 = arith.addf %269, %272 : vector<14x128xf32>
    %c59 = arith.constant 59 : index
    %274 = memref.load %arg2[%c59] : memref<96xf32, #tpu.memory_space<smem>>
    %275 = vector.broadcast %274 : f32 to vector<14x128xf32>
    %276 = arith.mulf %275, %19 : vector<14x128xf32>
    %277 = arith.addf %273, %276 : vector<14x128xf32>
    %cst_20 = arith.constant 0.000000e+00 : f32
    %278 = vector.broadcast %cst_20 : f32 to vector<14x128xf32>
    %279 = arith.maximumf %277, %278 : vector<14x128xf32>
    %c5_21 = arith.constant 5 : index
    %280 = memref.load %arg3[%c5_21] : memref<8xf32, #tpu.memory_space<smem>>
    %281 = vector.broadcast %280 : f32 to vector<14x128xf32>
    %c60 = arith.constant 60 : index
    %282 = memref.load %arg2[%c60] : memref<96xf32, #tpu.memory_space<smem>>
    %283 = vector.broadcast %282 : f32 to vector<14x128xf32>
    %284 = arith.mulf %283, %8 : vector<14x128xf32>
    %285 = arith.addf %281, %284 : vector<14x128xf32>
    %c61 = arith.constant 61 : index
    %286 = memref.load %arg2[%c61] : memref<96xf32, #tpu.memory_space<smem>>
    %287 = vector.broadcast %286 : f32 to vector<14x128xf32>
    %288 = arith.mulf %287, %9 : vector<14x128xf32>
    %289 = arith.addf %285, %288 : vector<14x128xf32>
    %c62 = arith.constant 62 : index
    %290 = memref.load %arg2[%c62] : memref<96xf32, #tpu.memory_space<smem>>
    %291 = vector.broadcast %290 : f32 to vector<14x128xf32>
    %292 = arith.mulf %291, %10 : vector<14x128xf32>
    %293 = arith.addf %289, %292 : vector<14x128xf32>
    %c63 = arith.constant 63 : index
    %294 = memref.load %arg2[%c63] : memref<96xf32, #tpu.memory_space<smem>>
    %295 = vector.broadcast %294 : f32 to vector<14x128xf32>
    %296 = arith.mulf %295, %11 : vector<14x128xf32>
    %297 = arith.addf %293, %296 : vector<14x128xf32>
    %c64 = arith.constant 64 : index
    %298 = memref.load %arg2[%c64] : memref<96xf32, #tpu.memory_space<smem>>
    %299 = vector.broadcast %298 : f32 to vector<14x128xf32>
    %300 = arith.mulf %299, %12 : vector<14x128xf32>
    %301 = arith.addf %297, %300 : vector<14x128xf32>
    %c65 = arith.constant 65 : index
    %302 = memref.load %arg2[%c65] : memref<96xf32, #tpu.memory_space<smem>>
    %303 = vector.broadcast %302 : f32 to vector<14x128xf32>
    %304 = arith.mulf %303, %13 : vector<14x128xf32>
    %305 = arith.addf %301, %304 : vector<14x128xf32>
    %c66 = arith.constant 66 : index
    %306 = memref.load %arg2[%c66] : memref<96xf32, #tpu.memory_space<smem>>
    %307 = vector.broadcast %306 : f32 to vector<14x128xf32>
    %308 = arith.mulf %307, %14 : vector<14x128xf32>
    %309 = arith.addf %305, %308 : vector<14x128xf32>
    %c67 = arith.constant 67 : index
    %310 = memref.load %arg2[%c67] : memref<96xf32, #tpu.memory_space<smem>>
    %311 = vector.broadcast %310 : f32 to vector<14x128xf32>
    %312 = arith.mulf %311, %15 : vector<14x128xf32>
    %313 = arith.addf %309, %312 : vector<14x128xf32>
    %c68 = arith.constant 68 : index
    %314 = memref.load %arg2[%c68] : memref<96xf32, #tpu.memory_space<smem>>
    %315 = vector.broadcast %314 : f32 to vector<14x128xf32>
    %316 = arith.mulf %315, %16 : vector<14x128xf32>
    %317 = arith.addf %313, %316 : vector<14x128xf32>
    %c69 = arith.constant 69 : index
    %318 = memref.load %arg2[%c69] : memref<96xf32, #tpu.memory_space<smem>>
    %319 = vector.broadcast %318 : f32 to vector<14x128xf32>
    %320 = arith.mulf %319, %17 : vector<14x128xf32>
    %321 = arith.addf %317, %320 : vector<14x128xf32>
    %c70 = arith.constant 70 : index
    %322 = memref.load %arg2[%c70] : memref<96xf32, #tpu.memory_space<smem>>
    %323 = vector.broadcast %322 : f32 to vector<14x128xf32>
    %324 = arith.mulf %323, %18 : vector<14x128xf32>
    %325 = arith.addf %321, %324 : vector<14x128xf32>
    %c71 = arith.constant 71 : index
    %326 = memref.load %arg2[%c71] : memref<96xf32, #tpu.memory_space<smem>>
    %327 = vector.broadcast %326 : f32 to vector<14x128xf32>
    %328 = arith.mulf %327, %19 : vector<14x128xf32>
    %329 = arith.addf %325, %328 : vector<14x128xf32>
    %cst_22 = arith.constant 0.000000e+00 : f32
    %330 = vector.broadcast %cst_22 : f32 to vector<14x128xf32>
    %331 = arith.maximumf %329, %330 : vector<14x128xf32>
    %c6_23 = arith.constant 6 : index
    %332 = memref.load %arg3[%c6_23] : memref<8xf32, #tpu.memory_space<smem>>
    %333 = vector.broadcast %332 : f32 to vector<14x128xf32>
    %c72 = arith.constant 72 : index
    %334 = memref.load %arg2[%c72] : memref<96xf32, #tpu.memory_space<smem>>
    %335 = vector.broadcast %334 : f32 to vector<14x128xf32>
    %336 = arith.mulf %335, %8 : vector<14x128xf32>
    %337 = arith.addf %333, %336 : vector<14x128xf32>
    %c73 = arith.constant 73 : index
    %338 = memref.load %arg2[%c73] : memref<96xf32, #tpu.memory_space<smem>>
    %339 = vector.broadcast %338 : f32 to vector<14x128xf32>
    %340 = arith.mulf %339, %9 : vector<14x128xf32>
    %341 = arith.addf %337, %340 : vector<14x128xf32>
    %c74 = arith.constant 74 : index
    %342 = memref.load %arg2[%c74] : memref<96xf32, #tpu.memory_space<smem>>
    %343 = vector.broadcast %342 : f32 to vector<14x128xf32>
    %344 = arith.mulf %343, %10 : vector<14x128xf32>
    %345 = arith.addf %341, %344 : vector<14x128xf32>
    %c75 = arith.constant 75 : index
    %346 = memref.load %arg2[%c75] : memref<96xf32, #tpu.memory_space<smem>>
    %347 = vector.broadcast %346 : f32 to vector<14x128xf32>
    %348 = arith.mulf %347, %11 : vector<14x128xf32>
    %349 = arith.addf %345, %348 : vector<14x128xf32>
    %c76 = arith.constant 76 : index
    %350 = memref.load %arg2[%c76] : memref<96xf32, #tpu.memory_space<smem>>
    %351 = vector.broadcast %350 : f32 to vector<14x128xf32>
    %352 = arith.mulf %351, %12 : vector<14x128xf32>
    %353 = arith.addf %349, %352 : vector<14x128xf32>
    %c77 = arith.constant 77 : index
    %354 = memref.load %arg2[%c77] : memref<96xf32, #tpu.memory_space<smem>>
    %355 = vector.broadcast %354 : f32 to vector<14x128xf32>
    %356 = arith.mulf %355, %13 : vector<14x128xf32>
    %357 = arith.addf %353, %356 : vector<14x128xf32>
    %c78 = arith.constant 78 : index
    %358 = memref.load %arg2[%c78] : memref<96xf32, #tpu.memory_space<smem>>
    %359 = vector.broadcast %358 : f32 to vector<14x128xf32>
    %360 = arith.mulf %359, %14 : vector<14x128xf32>
    %361 = arith.addf %357, %360 : vector<14x128xf32>
    %c79 = arith.constant 79 : index
    %362 = memref.load %arg2[%c79] : memref<96xf32, #tpu.memory_space<smem>>
    %363 = vector.broadcast %362 : f32 to vector<14x128xf32>
    %364 = arith.mulf %363, %15 : vector<14x128xf32>
    %365 = arith.addf %361, %364 : vector<14x128xf32>
    %c80 = arith.constant 80 : index
    %366 = memref.load %arg2[%c80] : memref<96xf32, #tpu.memory_space<smem>>
    %367 = vector.broadcast %366 : f32 to vector<14x128xf32>
    %368 = arith.mulf %367, %16 : vector<14x128xf32>
    %369 = arith.addf %365, %368 : vector<14x128xf32>
    %c81 = arith.constant 81 : index
    %370 = memref.load %arg2[%c81] : memref<96xf32, #tpu.memory_space<smem>>
    %371 = vector.broadcast %370 : f32 to vector<14x128xf32>
    %372 = arith.mulf %371, %17 : vector<14x128xf32>
    %373 = arith.addf %369, %372 : vector<14x128xf32>
    %c82 = arith.constant 82 : index
    %374 = memref.load %arg2[%c82] : memref<96xf32, #tpu.memory_space<smem>>
    %375 = vector.broadcast %374 : f32 to vector<14x128xf32>
    %376 = arith.mulf %375, %18 : vector<14x128xf32>
    %377 = arith.addf %373, %376 : vector<14x128xf32>
    %c83 = arith.constant 83 : index
    %378 = memref.load %arg2[%c83] : memref<96xf32, #tpu.memory_space<smem>>
    %379 = vector.broadcast %378 : f32 to vector<14x128xf32>
    %380 = arith.mulf %379, %19 : vector<14x128xf32>
    %381 = arith.addf %377, %380 : vector<14x128xf32>
    %cst_24 = arith.constant 0.000000e+00 : f32
    %382 = vector.broadcast %cst_24 : f32 to vector<14x128xf32>
    %383 = arith.maximumf %381, %382 : vector<14x128xf32>
    %c7_25 = arith.constant 7 : index
    %384 = memref.load %arg3[%c7_25] : memref<8xf32, #tpu.memory_space<smem>>
    %385 = vector.broadcast %384 : f32 to vector<14x128xf32>
    %c84 = arith.constant 84 : index
    %386 = memref.load %arg2[%c84] : memref<96xf32, #tpu.memory_space<smem>>
    %387 = vector.broadcast %386 : f32 to vector<14x128xf32>
    %388 = arith.mulf %387, %8 : vector<14x128xf32>
    %389 = arith.addf %385, %388 : vector<14x128xf32>
    %c85 = arith.constant 85 : index
    %390 = memref.load %arg2[%c85] : memref<96xf32, #tpu.memory_space<smem>>
    %391 = vector.broadcast %390 : f32 to vector<14x128xf32>
    %392 = arith.mulf %391, %9 : vector<14x128xf32>
    %393 = arith.addf %389, %392 : vector<14x128xf32>
    %c86 = arith.constant 86 : index
    %394 = memref.load %arg2[%c86] : memref<96xf32, #tpu.memory_space<smem>>
    %395 = vector.broadcast %394 : f32 to vector<14x128xf32>
    %396 = arith.mulf %395, %10 : vector<14x128xf32>
    %397 = arith.addf %393, %396 : vector<14x128xf32>
    %c87 = arith.constant 87 : index
    %398 = memref.load %arg2[%c87] : memref<96xf32, #tpu.memory_space<smem>>
    %399 = vector.broadcast %398 : f32 to vector<14x128xf32>
    %400 = arith.mulf %399, %11 : vector<14x128xf32>
    %401 = arith.addf %397, %400 : vector<14x128xf32>
    %c88 = arith.constant 88 : index
    %402 = memref.load %arg2[%c88] : memref<96xf32, #tpu.memory_space<smem>>
    %403 = vector.broadcast %402 : f32 to vector<14x128xf32>
    %404 = arith.mulf %403, %12 : vector<14x128xf32>
    %405 = arith.addf %401, %404 : vector<14x128xf32>
    %c89 = arith.constant 89 : index
    %406 = memref.load %arg2[%c89] : memref<96xf32, #tpu.memory_space<smem>>
    %407 = vector.broadcast %406 : f32 to vector<14x128xf32>
    %408 = arith.mulf %407, %13 : vector<14x128xf32>
    %409 = arith.addf %405, %408 : vector<14x128xf32>
    %c90 = arith.constant 90 : index
    %410 = memref.load %arg2[%c90] : memref<96xf32, #tpu.memory_space<smem>>
    %411 = vector.broadcast %410 : f32 to vector<14x128xf32>
    %412 = arith.mulf %411, %14 : vector<14x128xf32>
    %413 = arith.addf %409, %412 : vector<14x128xf32>
    %c91 = arith.constant 91 : index
    %414 = memref.load %arg2[%c91] : memref<96xf32, #tpu.memory_space<smem>>
    %415 = vector.broadcast %414 : f32 to vector<14x128xf32>
    %416 = arith.mulf %415, %15 : vector<14x128xf32>
    %417 = arith.addf %413, %416 : vector<14x128xf32>
    %c92 = arith.constant 92 : index
    %418 = memref.load %arg2[%c92] : memref<96xf32, #tpu.memory_space<smem>>
    %419 = vector.broadcast %418 : f32 to vector<14x128xf32>
    %420 = arith.mulf %419, %16 : vector<14x128xf32>
    %421 = arith.addf %417, %420 : vector<14x128xf32>
    %c93 = arith.constant 93 : index
    %422 = memref.load %arg2[%c93] : memref<96xf32, #tpu.memory_space<smem>>
    %423 = vector.broadcast %422 : f32 to vector<14x128xf32>
    %424 = arith.mulf %423, %17 : vector<14x128xf32>
    %425 = arith.addf %421, %424 : vector<14x128xf32>
    %c94 = arith.constant 94 : index
    %426 = memref.load %arg2[%c94] : memref<96xf32, #tpu.memory_space<smem>>
    %427 = vector.broadcast %426 : f32 to vector<14x128xf32>
    %428 = arith.mulf %427, %18 : vector<14x128xf32>
    %429 = arith.addf %425, %428 : vector<14x128xf32>
    %c95 = arith.constant 95 : index
    %430 = memref.load %arg2[%c95] : memref<96xf32, #tpu.memory_space<smem>>
    %431 = vector.broadcast %430 : f32 to vector<14x128xf32>
    %432 = arith.mulf %431, %19 : vector<14x128xf32>
    %433 = arith.addf %429, %432 : vector<14x128xf32>
    %cst_26 = arith.constant 0.000000e+00 : f32
    %434 = vector.broadcast %cst_26 : f32 to vector<14x128xf32>
    %435 = arith.maximumf %433, %434 : vector<14x128xf32>
    %c0_27 = arith.constant 0 : index
    %436 = memref.load %arg5[%c0_27] : memref<8xf32, #tpu.memory_space<smem>>
    %437 = vector.broadcast %436 : f32 to vector<14x128xf32>
    %c0_28 = arith.constant 0 : index
    %438 = memref.load %arg4[%c0_28] : memref<64xf32, #tpu.memory_space<smem>>
    %439 = vector.broadcast %438 : f32 to vector<14x128xf32>
    %440 = arith.mulf %439, %71 : vector<14x128xf32>
    %441 = arith.addf %437, %440 : vector<14x128xf32>
    %c1_29 = arith.constant 1 : index
    %442 = memref.load %arg4[%c1_29] : memref<64xf32, #tpu.memory_space<smem>>
    %443 = vector.broadcast %442 : f32 to vector<14x128xf32>
    %444 = arith.mulf %443, %123 : vector<14x128xf32>
    %445 = arith.addf %441, %444 : vector<14x128xf32>
    %c2_30 = arith.constant 2 : index
    %446 = memref.load %arg4[%c2_30] : memref<64xf32, #tpu.memory_space<smem>>
    %447 = vector.broadcast %446 : f32 to vector<14x128xf32>
    %448 = arith.mulf %447, %175 : vector<14x128xf32>
    %449 = arith.addf %445, %448 : vector<14x128xf32>
    %c3_31 = arith.constant 3 : index
    %450 = memref.load %arg4[%c3_31] : memref<64xf32, #tpu.memory_space<smem>>
    %451 = vector.broadcast %450 : f32 to vector<14x128xf32>
    %452 = arith.mulf %451, %227 : vector<14x128xf32>
    %453 = arith.addf %449, %452 : vector<14x128xf32>
    %c4_32 = arith.constant 4 : index
    %454 = memref.load %arg4[%c4_32] : memref<64xf32, #tpu.memory_space<smem>>
    %455 = vector.broadcast %454 : f32 to vector<14x128xf32>
    %456 = arith.mulf %455, %279 : vector<14x128xf32>
    %457 = arith.addf %453, %456 : vector<14x128xf32>
    %c5_33 = arith.constant 5 : index
    %458 = memref.load %arg4[%c5_33] : memref<64xf32, #tpu.memory_space<smem>>
    %459 = vector.broadcast %458 : f32 to vector<14x128xf32>
    %460 = arith.mulf %459, %331 : vector<14x128xf32>
    %461 = arith.addf %457, %460 : vector<14x128xf32>
    %c6_34 = arith.constant 6 : index
    %462 = memref.load %arg4[%c6_34] : memref<64xf32, #tpu.memory_space<smem>>
    %463 = vector.broadcast %462 : f32 to vector<14x128xf32>
    %464 = arith.mulf %463, %383 : vector<14x128xf32>
    %465 = arith.addf %461, %464 : vector<14x128xf32>
    %c7_35 = arith.constant 7 : index
    %466 = memref.load %arg4[%c7_35] : memref<64xf32, #tpu.memory_space<smem>>
    %467 = vector.broadcast %466 : f32 to vector<14x128xf32>
    %468 = arith.mulf %467, %435 : vector<14x128xf32>
    %469 = arith.addf %465, %468 : vector<14x128xf32>
    %cst_36 = arith.constant 0.000000e+00 : f32
    %470 = vector.broadcast %cst_36 : f32 to vector<14x128xf32>
    %471 = arith.maximumf %469, %470 : vector<14x128xf32>
    %c1_37 = arith.constant 1 : index
    %472 = memref.load %arg5[%c1_37] : memref<8xf32, #tpu.memory_space<smem>>
    %473 = vector.broadcast %472 : f32 to vector<14x128xf32>
    %c8_38 = arith.constant 8 : index
    %474 = memref.load %arg4[%c8_38] : memref<64xf32, #tpu.memory_space<smem>>
    %475 = vector.broadcast %474 : f32 to vector<14x128xf32>
    %476 = arith.mulf %475, %71 : vector<14x128xf32>
    %477 = arith.addf %473, %476 : vector<14x128xf32>
    %c9_39 = arith.constant 9 : index
    %478 = memref.load %arg4[%c9_39] : memref<64xf32, #tpu.memory_space<smem>>
    %479 = vector.broadcast %478 : f32 to vector<14x128xf32>
    %480 = arith.mulf %479, %123 : vector<14x128xf32>
    %481 = arith.addf %477, %480 : vector<14x128xf32>
    %c10_40 = arith.constant 10 : index
    %482 = memref.load %arg4[%c10_40] : memref<64xf32, #tpu.memory_space<smem>>
    %483 = vector.broadcast %482 : f32 to vector<14x128xf32>
    %484 = arith.mulf %483, %175 : vector<14x128xf32>
    %485 = arith.addf %481, %484 : vector<14x128xf32>
    %c11_41 = arith.constant 11 : index
    %486 = memref.load %arg4[%c11_41] : memref<64xf32, #tpu.memory_space<smem>>
    %487 = vector.broadcast %486 : f32 to vector<14x128xf32>
    %488 = arith.mulf %487, %227 : vector<14x128xf32>
    %489 = arith.addf %485, %488 : vector<14x128xf32>
    %c12_42 = arith.constant 12 : index
    %490 = memref.load %arg4[%c12_42] : memref<64xf32, #tpu.memory_space<smem>>
    %491 = vector.broadcast %490 : f32 to vector<14x128xf32>
    %492 = arith.mulf %491, %279 : vector<14x128xf32>
    %493 = arith.addf %489, %492 : vector<14x128xf32>
    %c13_43 = arith.constant 13 : index
    %494 = memref.load %arg4[%c13_43] : memref<64xf32, #tpu.memory_space<smem>>
    %495 = vector.broadcast %494 : f32 to vector<14x128xf32>
    %496 = arith.mulf %495, %331 : vector<14x128xf32>
    %497 = arith.addf %493, %496 : vector<14x128xf32>
    %c14_44 = arith.constant 14 : index
    %498 = memref.load %arg4[%c14_44] : memref<64xf32, #tpu.memory_space<smem>>
    %499 = vector.broadcast %498 : f32 to vector<14x128xf32>
    %500 = arith.mulf %499, %383 : vector<14x128xf32>
    %501 = arith.addf %497, %500 : vector<14x128xf32>
    %c15_45 = arith.constant 15 : index
    %502 = memref.load %arg4[%c15_45] : memref<64xf32, #tpu.memory_space<smem>>
    %503 = vector.broadcast %502 : f32 to vector<14x128xf32>
    %504 = arith.mulf %503, %435 : vector<14x128xf32>
    %505 = arith.addf %501, %504 : vector<14x128xf32>
    %cst_46 = arith.constant 0.000000e+00 : f32
    %506 = vector.broadcast %cst_46 : f32 to vector<14x128xf32>
    %507 = arith.maximumf %505, %506 : vector<14x128xf32>
    %c2_47 = arith.constant 2 : index
    %508 = memref.load %arg5[%c2_47] : memref<8xf32, #tpu.memory_space<smem>>
    %509 = vector.broadcast %508 : f32 to vector<14x128xf32>
    %c16_48 = arith.constant 16 : index
    %510 = memref.load %arg4[%c16_48] : memref<64xf32, #tpu.memory_space<smem>>
    %511 = vector.broadcast %510 : f32 to vector<14x128xf32>
    %512 = arith.mulf %511, %71 : vector<14x128xf32>
    %513 = arith.addf %509, %512 : vector<14x128xf32>
    %c17_49 = arith.constant 17 : index
    %514 = memref.load %arg4[%c17_49] : memref<64xf32, #tpu.memory_space<smem>>
    %515 = vector.broadcast %514 : f32 to vector<14x128xf32>
    %516 = arith.mulf %515, %123 : vector<14x128xf32>
    %517 = arith.addf %513, %516 : vector<14x128xf32>
    %c18_50 = arith.constant 18 : index
    %518 = memref.load %arg4[%c18_50] : memref<64xf32, #tpu.memory_space<smem>>
    %519 = vector.broadcast %518 : f32 to vector<14x128xf32>
    %520 = arith.mulf %519, %175 : vector<14x128xf32>
    %521 = arith.addf %517, %520 : vector<14x128xf32>
    %c19_51 = arith.constant 19 : index
    %522 = memref.load %arg4[%c19_51] : memref<64xf32, #tpu.memory_space<smem>>
    %523 = vector.broadcast %522 : f32 to vector<14x128xf32>
    %524 = arith.mulf %523, %227 : vector<14x128xf32>
    %525 = arith.addf %521, %524 : vector<14x128xf32>
    %c20_52 = arith.constant 20 : index
    %526 = memref.load %arg4[%c20_52] : memref<64xf32, #tpu.memory_space<smem>>
    %527 = vector.broadcast %526 : f32 to vector<14x128xf32>
    %528 = arith.mulf %527, %279 : vector<14x128xf32>
    %529 = arith.addf %525, %528 : vector<14x128xf32>
    %c21_53 = arith.constant 21 : index
    %530 = memref.load %arg4[%c21_53] : memref<64xf32, #tpu.memory_space<smem>>
    %531 = vector.broadcast %530 : f32 to vector<14x128xf32>
    %532 = arith.mulf %531, %331 : vector<14x128xf32>
    %533 = arith.addf %529, %532 : vector<14x128xf32>
    %c22_54 = arith.constant 22 : index
    %534 = memref.load %arg4[%c22_54] : memref<64xf32, #tpu.memory_space<smem>>
    %535 = vector.broadcast %534 : f32 to vector<14x128xf32>
    %536 = arith.mulf %535, %383 : vector<14x128xf32>
    %537 = arith.addf %533, %536 : vector<14x128xf32>
    %c23_55 = arith.constant 23 : index
    %538 = memref.load %arg4[%c23_55] : memref<64xf32, #tpu.memory_space<smem>>
    %539 = vector.broadcast %538 : f32 to vector<14x128xf32>
    %540 = arith.mulf %539, %435 : vector<14x128xf32>
    %541 = arith.addf %537, %540 : vector<14x128xf32>
    %cst_56 = arith.constant 0.000000e+00 : f32
    %542 = vector.broadcast %cst_56 : f32 to vector<14x128xf32>
    %543 = arith.maximumf %541, %542 : vector<14x128xf32>
    %c3_57 = arith.constant 3 : index
    %544 = memref.load %arg5[%c3_57] : memref<8xf32, #tpu.memory_space<smem>>
    %545 = vector.broadcast %544 : f32 to vector<14x128xf32>
    %c24_58 = arith.constant 24 : index
    %546 = memref.load %arg4[%c24_58] : memref<64xf32, #tpu.memory_space<smem>>
    %547 = vector.broadcast %546 : f32 to vector<14x128xf32>
    %548 = arith.mulf %547, %71 : vector<14x128xf32>
    %549 = arith.addf %545, %548 : vector<14x128xf32>
    %c25_59 = arith.constant 25 : index
    %550 = memref.load %arg4[%c25_59] : memref<64xf32, #tpu.memory_space<smem>>
    %551 = vector.broadcast %550 : f32 to vector<14x128xf32>
    %552 = arith.mulf %551, %123 : vector<14x128xf32>
    %553 = arith.addf %549, %552 : vector<14x128xf32>
    %c26_60 = arith.constant 26 : index
    %554 = memref.load %arg4[%c26_60] : memref<64xf32, #tpu.memory_space<smem>>
    %555 = vector.broadcast %554 : f32 to vector<14x128xf32>
    %556 = arith.mulf %555, %175 : vector<14x128xf32>
    %557 = arith.addf %553, %556 : vector<14x128xf32>
    %c27_61 = arith.constant 27 : index
    %558 = memref.load %arg4[%c27_61] : memref<64xf32, #tpu.memory_space<smem>>
    %559 = vector.broadcast %558 : f32 to vector<14x128xf32>
    %560 = arith.mulf %559, %227 : vector<14x128xf32>
    %561 = arith.addf %557, %560 : vector<14x128xf32>
    %c28_62 = arith.constant 28 : index
    %562 = memref.load %arg4[%c28_62] : memref<64xf32, #tpu.memory_space<smem>>
    %563 = vector.broadcast %562 : f32 to vector<14x128xf32>
    %564 = arith.mulf %563, %279 : vector<14x128xf32>
    %565 = arith.addf %561, %564 : vector<14x128xf32>
    %c29_63 = arith.constant 29 : index
    %566 = memref.load %arg4[%c29_63] : memref<64xf32, #tpu.memory_space<smem>>
    %567 = vector.broadcast %566 : f32 to vector<14x128xf32>
    %568 = arith.mulf %567, %331 : vector<14x128xf32>
    %569 = arith.addf %565, %568 : vector<14x128xf32>
    %c30_64 = arith.constant 30 : index
    %570 = memref.load %arg4[%c30_64] : memref<64xf32, #tpu.memory_space<smem>>
    %571 = vector.broadcast %570 : f32 to vector<14x128xf32>
    %572 = arith.mulf %571, %383 : vector<14x128xf32>
    %573 = arith.addf %569, %572 : vector<14x128xf32>
    %c31_65 = arith.constant 31 : index
    %574 = memref.load %arg4[%c31_65] : memref<64xf32, #tpu.memory_space<smem>>
    %575 = vector.broadcast %574 : f32 to vector<14x128xf32>
    %576 = arith.mulf %575, %435 : vector<14x128xf32>
    %577 = arith.addf %573, %576 : vector<14x128xf32>
    %cst_66 = arith.constant 0.000000e+00 : f32
    %578 = vector.broadcast %cst_66 : f32 to vector<14x128xf32>
    %579 = arith.maximumf %577, %578 : vector<14x128xf32>
    %c4_67 = arith.constant 4 : index
    %580 = memref.load %arg5[%c4_67] : memref<8xf32, #tpu.memory_space<smem>>
    %581 = vector.broadcast %580 : f32 to vector<14x128xf32>
    %c32_68 = arith.constant 32 : index
    %582 = memref.load %arg4[%c32_68] : memref<64xf32, #tpu.memory_space<smem>>
    %583 = vector.broadcast %582 : f32 to vector<14x128xf32>
    %584 = arith.mulf %583, %71 : vector<14x128xf32>
    %585 = arith.addf %581, %584 : vector<14x128xf32>
    %c33_69 = arith.constant 33 : index
    %586 = memref.load %arg4[%c33_69] : memref<64xf32, #tpu.memory_space<smem>>
    %587 = vector.broadcast %586 : f32 to vector<14x128xf32>
    %588 = arith.mulf %587, %123 : vector<14x128xf32>
    %589 = arith.addf %585, %588 : vector<14x128xf32>
    %c34_70 = arith.constant 34 : index
    %590 = memref.load %arg4[%c34_70] : memref<64xf32, #tpu.memory_space<smem>>
    %591 = vector.broadcast %590 : f32 to vector<14x128xf32>
    %592 = arith.mulf %591, %175 : vector<14x128xf32>
    %593 = arith.addf %589, %592 : vector<14x128xf32>
    %c35_71 = arith.constant 35 : index
    %594 = memref.load %arg4[%c35_71] : memref<64xf32, #tpu.memory_space<smem>>
    %595 = vector.broadcast %594 : f32 to vector<14x128xf32>
    %596 = arith.mulf %595, %227 : vector<14x128xf32>
    %597 = arith.addf %593, %596 : vector<14x128xf32>
    %c36_72 = arith.constant 36 : index
    %598 = memref.load %arg4[%c36_72] : memref<64xf32, #tpu.memory_space<smem>>
    %599 = vector.broadcast %598 : f32 to vector<14x128xf32>
    %600 = arith.mulf %599, %279 : vector<14x128xf32>
    %601 = arith.addf %597, %600 : vector<14x128xf32>
    %c37_73 = arith.constant 37 : index
    %602 = memref.load %arg4[%c37_73] : memref<64xf32, #tpu.memory_space<smem>>
    %603 = vector.broadcast %602 : f32 to vector<14x128xf32>
    %604 = arith.mulf %603, %331 : vector<14x128xf32>
    %605 = arith.addf %601, %604 : vector<14x128xf32>
    %c38_74 = arith.constant 38 : index
    %606 = memref.load %arg4[%c38_74] : memref<64xf32, #tpu.memory_space<smem>>
    %607 = vector.broadcast %606 : f32 to vector<14x128xf32>
    %608 = arith.mulf %607, %383 : vector<14x128xf32>
    %609 = arith.addf %605, %608 : vector<14x128xf32>
    %c39_75 = arith.constant 39 : index
    %610 = memref.load %arg4[%c39_75] : memref<64xf32, #tpu.memory_space<smem>>
    %611 = vector.broadcast %610 : f32 to vector<14x128xf32>
    %612 = arith.mulf %611, %435 : vector<14x128xf32>
    %613 = arith.addf %609, %612 : vector<14x128xf32>
    %cst_76 = arith.constant 0.000000e+00 : f32
    %614 = vector.broadcast %cst_76 : f32 to vector<14x128xf32>
    %615 = arith.maximumf %613, %614 : vector<14x128xf32>
    %c5_77 = arith.constant 5 : index
    %616 = memref.load %arg5[%c5_77] : memref<8xf32, #tpu.memory_space<smem>>
    %617 = vector.broadcast %616 : f32 to vector<14x128xf32>
    %c40_78 = arith.constant 40 : index
    %618 = memref.load %arg4[%c40_78] : memref<64xf32, #tpu.memory_space<smem>>
    %619 = vector.broadcast %618 : f32 to vector<14x128xf32>
    %620 = arith.mulf %619, %71 : vector<14x128xf32>
    %621 = arith.addf %617, %620 : vector<14x128xf32>
    %c41_79 = arith.constant 41 : index
    %622 = memref.load %arg4[%c41_79] : memref<64xf32, #tpu.memory_space<smem>>
    %623 = vector.broadcast %622 : f32 to vector<14x128xf32>
    %624 = arith.mulf %623, %123 : vector<14x128xf32>
    %625 = arith.addf %621, %624 : vector<14x128xf32>
    %c42_80 = arith.constant 42 : index
    %626 = memref.load %arg4[%c42_80] : memref<64xf32, #tpu.memory_space<smem>>
    %627 = vector.broadcast %626 : f32 to vector<14x128xf32>
    %628 = arith.mulf %627, %175 : vector<14x128xf32>
    %629 = arith.addf %625, %628 : vector<14x128xf32>
    %c43_81 = arith.constant 43 : index
    %630 = memref.load %arg4[%c43_81] : memref<64xf32, #tpu.memory_space<smem>>
    %631 = vector.broadcast %630 : f32 to vector<14x128xf32>
    %632 = arith.mulf %631, %227 : vector<14x128xf32>
    %633 = arith.addf %629, %632 : vector<14x128xf32>
    %c44_82 = arith.constant 44 : index
    %634 = memref.load %arg4[%c44_82] : memref<64xf32, #tpu.memory_space<smem>>
    %635 = vector.broadcast %634 : f32 to vector<14x128xf32>
    %636 = arith.mulf %635, %279 : vector<14x128xf32>
    %637 = arith.addf %633, %636 : vector<14x128xf32>
    %c45_83 = arith.constant 45 : index
    %638 = memref.load %arg4[%c45_83] : memref<64xf32, #tpu.memory_space<smem>>
    %639 = vector.broadcast %638 : f32 to vector<14x128xf32>
    %640 = arith.mulf %639, %331 : vector<14x128xf32>
    %641 = arith.addf %637, %640 : vector<14x128xf32>
    %c46_84 = arith.constant 46 : index
    %642 = memref.load %arg4[%c46_84] : memref<64xf32, #tpu.memory_space<smem>>
    %643 = vector.broadcast %642 : f32 to vector<14x128xf32>
    %644 = arith.mulf %643, %383 : vector<14x128xf32>
    %645 = arith.addf %641, %644 : vector<14x128xf32>
    %c47_85 = arith.constant 47 : index
    %646 = memref.load %arg4[%c47_85] : memref<64xf32, #tpu.memory_space<smem>>
    %647 = vector.broadcast %646 : f32 to vector<14x128xf32>
    %648 = arith.mulf %647, %435 : vector<14x128xf32>
    %649 = arith.addf %645, %648 : vector<14x128xf32>
    %cst_86 = arith.constant 0.000000e+00 : f32
    %650 = vector.broadcast %cst_86 : f32 to vector<14x128xf32>
    %651 = arith.maximumf %649, %650 : vector<14x128xf32>
    %c6_87 = arith.constant 6 : index
    %652 = memref.load %arg5[%c6_87] : memref<8xf32, #tpu.memory_space<smem>>
    %653 = vector.broadcast %652 : f32 to vector<14x128xf32>
    %c48_88 = arith.constant 48 : index
    %654 = memref.load %arg4[%c48_88] : memref<64xf32, #tpu.memory_space<smem>>
    %655 = vector.broadcast %654 : f32 to vector<14x128xf32>
    %656 = arith.mulf %655, %71 : vector<14x128xf32>
    %657 = arith.addf %653, %656 : vector<14x128xf32>
    %c49_89 = arith.constant 49 : index
    %658 = memref.load %arg4[%c49_89] : memref<64xf32, #tpu.memory_space<smem>>
    %659 = vector.broadcast %658 : f32 to vector<14x128xf32>
    %660 = arith.mulf %659, %123 : vector<14x128xf32>
    %661 = arith.addf %657, %660 : vector<14x128xf32>
    %c50_90 = arith.constant 50 : index
    %662 = memref.load %arg4[%c50_90] : memref<64xf32, #tpu.memory_space<smem>>
    %663 = vector.broadcast %662 : f32 to vector<14x128xf32>
    %664 = arith.mulf %663, %175 : vector<14x128xf32>
    %665 = arith.addf %661, %664 : vector<14x128xf32>
    %c51_91 = arith.constant 51 : index
    %666 = memref.load %arg4[%c51_91] : memref<64xf32, #tpu.memory_space<smem>>
    %667 = vector.broadcast %666 : f32 to vector<14x128xf32>
    %668 = arith.mulf %667, %227 : vector<14x128xf32>
    %669 = arith.addf %665, %668 : vector<14x128xf32>
    %c52_92 = arith.constant 52 : index
    %670 = memref.load %arg4[%c52_92] : memref<64xf32, #tpu.memory_space<smem>>
    %671 = vector.broadcast %670 : f32 to vector<14x128xf32>
    %672 = arith.mulf %671, %279 : vector<14x128xf32>
    %673 = arith.addf %669, %672 : vector<14x128xf32>
    %c53_93 = arith.constant 53 : index
    %674 = memref.load %arg4[%c53_93] : memref<64xf32, #tpu.memory_space<smem>>
    %675 = vector.broadcast %674 : f32 to vector<14x128xf32>
    %676 = arith.mulf %675, %331 : vector<14x128xf32>
    %677 = arith.addf %673, %676 : vector<14x128xf32>
    %c54_94 = arith.constant 54 : index
    %678 = memref.load %arg4[%c54_94] : memref<64xf32, #tpu.memory_space<smem>>
    %679 = vector.broadcast %678 : f32 to vector<14x128xf32>
    %680 = arith.mulf %679, %383 : vector<14x128xf32>
    %681 = arith.addf %677, %680 : vector<14x128xf32>
    %c55_95 = arith.constant 55 : index
    %682 = memref.load %arg4[%c55_95] : memref<64xf32, #tpu.memory_space<smem>>
    %683 = vector.broadcast %682 : f32 to vector<14x128xf32>
    %684 = arith.mulf %683, %435 : vector<14x128xf32>
    %685 = arith.addf %681, %684 : vector<14x128xf32>
    %cst_96 = arith.constant 0.000000e+00 : f32
    %686 = vector.broadcast %cst_96 : f32 to vector<14x128xf32>
    %687 = arith.maximumf %685, %686 : vector<14x128xf32>
    %c7_97 = arith.constant 7 : index
    %688 = memref.load %arg5[%c7_97] : memref<8xf32, #tpu.memory_space<smem>>
    %689 = vector.broadcast %688 : f32 to vector<14x128xf32>
    %c56_98 = arith.constant 56 : index
    %690 = memref.load %arg4[%c56_98] : memref<64xf32, #tpu.memory_space<smem>>
    %691 = vector.broadcast %690 : f32 to vector<14x128xf32>
    %692 = arith.mulf %691, %71 : vector<14x128xf32>
    %693 = arith.addf %689, %692 : vector<14x128xf32>
    %c57_99 = arith.constant 57 : index
    %694 = memref.load %arg4[%c57_99] : memref<64xf32, #tpu.memory_space<smem>>
    %695 = vector.broadcast %694 : f32 to vector<14x128xf32>
    %696 = arith.mulf %695, %123 : vector<14x128xf32>
    %697 = arith.addf %693, %696 : vector<14x128xf32>
    %c58_100 = arith.constant 58 : index
    %698 = memref.load %arg4[%c58_100] : memref<64xf32, #tpu.memory_space<smem>>
    %699 = vector.broadcast %698 : f32 to vector<14x128xf32>
    %700 = arith.mulf %699, %175 : vector<14x128xf32>
    %701 = arith.addf %697, %700 : vector<14x128xf32>
    %c59_101 = arith.constant 59 : index
    %702 = memref.load %arg4[%c59_101] : memref<64xf32, #tpu.memory_space<smem>>
    %703 = vector.broadcast %702 : f32 to vector<14x128xf32>
    %704 = arith.mulf %703, %227 : vector<14x128xf32>
    %705 = arith.addf %701, %704 : vector<14x128xf32>
    %c60_102 = arith.constant 60 : index
    %706 = memref.load %arg4[%c60_102] : memref<64xf32, #tpu.memory_space<smem>>
    %707 = vector.broadcast %706 : f32 to vector<14x128xf32>
    %708 = arith.mulf %707, %279 : vector<14x128xf32>
    %709 = arith.addf %705, %708 : vector<14x128xf32>
    %c61_103 = arith.constant 61 : index
    %710 = memref.load %arg4[%c61_103] : memref<64xf32, #tpu.memory_space<smem>>
    %711 = vector.broadcast %710 : f32 to vector<14x128xf32>
    %712 = arith.mulf %711, %331 : vector<14x128xf32>
    %713 = arith.addf %709, %712 : vector<14x128xf32>
    %c62_104 = arith.constant 62 : index
    %714 = memref.load %arg4[%c62_104] : memref<64xf32, #tpu.memory_space<smem>>
    %715 = vector.broadcast %714 : f32 to vector<14x128xf32>
    %716 = arith.mulf %715, %383 : vector<14x128xf32>
    %717 = arith.addf %713, %716 : vector<14x128xf32>
    %c63_105 = arith.constant 63 : index
    %718 = memref.load %arg4[%c63_105] : memref<64xf32, #tpu.memory_space<smem>>
    %719 = vector.broadcast %718 : f32 to vector<14x128xf32>
    %720 = arith.mulf %719, %435 : vector<14x128xf32>
    %721 = arith.addf %717, %720 : vector<14x128xf32>
    %cst_106 = arith.constant 0.000000e+00 : f32
    %722 = vector.broadcast %cst_106 : f32 to vector<14x128xf32>
    %723 = arith.maximumf %721, %722 : vector<14x128xf32>
    %c0_107 = arith.constant 0 : index
    %724 = memref.load %arg7[%c0_107] : memref<1xf32, #tpu.memory_space<smem>>
    %725 = vector.broadcast %724 : f32 to vector<14x128xf32>
    %c0_108 = arith.constant 0 : index
    %726 = memref.load %arg6[%c0_108] : memref<8xf32, #tpu.memory_space<smem>>
    %727 = vector.broadcast %726 : f32 to vector<14x128xf32>
    %728 = arith.mulf %727, %471 : vector<14x128xf32>
    %729 = arith.addf %725, %728 : vector<14x128xf32>
    %c1_109 = arith.constant 1 : index
    %730 = memref.load %arg6[%c1_109] : memref<8xf32, #tpu.memory_space<smem>>
    %731 = vector.broadcast %730 : f32 to vector<14x128xf32>
    %732 = arith.mulf %731, %507 : vector<14x128xf32>
    %733 = arith.addf %729, %732 : vector<14x128xf32>
    %c2_110 = arith.constant 2 : index
    %734 = memref.load %arg6[%c2_110] : memref<8xf32, #tpu.memory_space<smem>>
    %735 = vector.broadcast %734 : f32 to vector<14x128xf32>
    %736 = arith.mulf %735, %543 : vector<14x128xf32>
    %737 = arith.addf %733, %736 : vector<14x128xf32>
    %c3_111 = arith.constant 3 : index
    %738 = memref.load %arg6[%c3_111] : memref<8xf32, #tpu.memory_space<smem>>
    %739 = vector.broadcast %738 : f32 to vector<14x128xf32>
    %740 = arith.mulf %739, %579 : vector<14x128xf32>
    %741 = arith.addf %737, %740 : vector<14x128xf32>
    %c4_112 = arith.constant 4 : index
    %742 = memref.load %arg6[%c4_112] : memref<8xf32, #tpu.memory_space<smem>>
    %743 = vector.broadcast %742 : f32 to vector<14x128xf32>
    %744 = arith.mulf %743, %615 : vector<14x128xf32>
    %745 = arith.addf %741, %744 : vector<14x128xf32>
    %c5_113 = arith.constant 5 : index
    %746 = memref.load %arg6[%c5_113] : memref<8xf32, #tpu.memory_space<smem>>
    %747 = vector.broadcast %746 : f32 to vector<14x128xf32>
    %748 = arith.mulf %747, %651 : vector<14x128xf32>
    %749 = arith.addf %745, %748 : vector<14x128xf32>
    %c6_114 = arith.constant 6 : index
    %750 = memref.load %arg6[%c6_114] : memref<8xf32, #tpu.memory_space<smem>>
    %751 = vector.broadcast %750 : f32 to vector<14x128xf32>
    %752 = arith.mulf %751, %687 : vector<14x128xf32>
    %753 = arith.addf %749, %752 : vector<14x128xf32>
    %c7_115 = arith.constant 7 : index
    %754 = memref.load %arg6[%c7_115] : memref<8xf32, #tpu.memory_space<smem>>
    %755 = vector.broadcast %754 : f32 to vector<14x128xf32>
    %756 = arith.mulf %755, %723 : vector<14x128xf32>
    %757 = arith.addf %753, %756 : vector<14x128xf32>
    %c0_116 = arith.constant 0 : index
    %c0_117 = arith.constant 0 : index
    %758 = vector.load %arg8[%c0_116, %c0_117] : memref<14x128xf32, #tpu.memory_space<vmem>>, vector<14x128xf32>
    tpu.vector_store %arg8[%c0_116, %c0_117], %757 {strides = array<i32>} : memref<14x128xf32, #tpu.memory_space<vmem>>, vector<14x128xf32>,
    return
  }
  func.func @transform_0(%arg0: i32) -> (i32, i32, i32) {
    %c0_i32 = arith.constant 0 : i32
    %c0_i32_0 = arith.constant 0 : i32
    %c0_i32_1 = arith.constant 0 : i32
    return %c0_i32, %c0_i32_0, %arg0 : i32, i32, i32
  }
  func.func @transform_1(%arg0: i32) -> i32 {
    %c0_i32 = arith.constant 0 : i32
    %c0_i32_0 = arith.constant 0 : i32
    return %c0_i32 : i32
  }
  func.func @transform_2(%arg0: i32) -> i32 {
    %c0_i32 = arith.constant 0 : i32
    %c0_i32_0 = arith.constant 0 : i32
    return %c0_i32 : i32
  }
  func.func @transform_3(%arg0: i32) -> i32 {
    %c0_i32 = arith.constant 0 : i32
    %c0_i32_0 = arith.constant 0 : i32
    return %c0_i32 : i32
  }
  func.func @transform_4(%arg0: i32) -> i32 {
    %c0_i32 = arith.constant 0 : i32
    %c0_i32_0 = arith.constant 0 : i32
    return %c0_i32 : i32
  }
  func.func @transform_5(%arg0: i32) -> i32 {
    %c0_i32 = arith.constant 0 : i32
    %c0_i32_0 = arith.constant 0 : i32
    return %c0_i32 : i32
  }
  func.func @transform_6(%arg0: i32) -> i32 {
    %c0_i32 = arith.constant 0 : i32
    %c0_i32_0 = arith.constant 0 : i32
    return %c0_i32 : i32
  }
  func.func @transform_7(%arg0: i32) -> (i32, i32) {
    %c0_i32 = arith.constant 0 : i32
    %c0_i32_0 = arith.constant 0 : i32
    return %c0_i32, %arg0 : i32, i32
  }
}

</mosaic_0001>

<llo_original>
// kernel: tpu_custom_call.1
$region0: #{tpu_custom_call.1}
  #allocation0 [shape = 'u32[]', space=smem, size = 0x4, offset = 0x4, fixed_abs, tag = 'smem constant byte address 0x4 - core index']
  #allocation1 [shape = 'u32[144,128]{1,0:T(1,128)}', space=vmem, size = 0x12000, scoped, tag = 'internal scratch']
  #allocation2 [shape = 'f32[1]{0:T(128)S(6)}', space=smem, size = 0x200, scoped, tag = 'scoped memory for tpu_custom_call.1']
  %s0 = inlined_call_operand.hbm [shape: f32[4,16,128], index: 0, kind: input, shape index: {}]
  %s1 = inlined_call_operand.vmem [shape: f32[96], index: 1, kind: input, shape index: {}]
  %s2 = inlined_call_operand.vmem [shape: f32[8], index: 2, kind: input, shape index: {}]
  %s3 = inlined_call_operand.vmem [shape: f32[64], index: 3, kind: input, shape index: {}]
  %s4 = inlined_call_operand.vmem [shape: f32[8], index: 4, kind: input, shape index: {}]
  %s5 = inlined_call_operand.vmem [shape: f32[8], index: 5, kind: input, shape index: {}]
  %s6 = inlined_call_operand.<no memory space> [shape: f32[1], index: 6, kind: input, shape index: {}]
  %s7 = inlined_call_operand.hbm [shape: f32[14,128], index: 7, kind: output, shape index: {}]
  %s8 = sld [smem:[#allocation0]]
  $region62: #{tpu_custom_call.1} parent=0
    _
  %s10 = ssub.s32 1, %s8
  %s11 = scalar_select 0, %s10, %s8
  %12 = sst [smem:[#allocation2]] %s6
  $region1: #{tpu_custom_call.1} parent=0
    #allocation3 [shape = 'u8[32768]{0}', space=vmem, size = 0x8000, scoped, tag = 'input window, operand 0, single buffered']
    #allocation4 [shape = 's32[1]{0}', space=sflag, size = 0x4, scoped, tag = 'scoped memory for tpu_custom_call.1']
    #allocation5 [shape = 's32[1]{0}', space=sflag, size = 0x4, scoped, tag = 'scoped memory for tpu_custom_call.1']
    #allocation6 [shape = 's32[1]{0}', space=sflag, size = 0x4, scoped, tag = 'scoped memory for tpu_custom_call.1']
    #allocation7 [shape = 'u8[512]{0}', space=smem, size = 0x200, scoped, tag = 'input window, operand 1, single buffered']
    #allocation8 [shape = 'u8[512]{0}', space=smem, size = 0x200, scoped, tag = 'input window, operand 2, single buffered']
    #allocation9 [shape = 's32[1]{0}', space=sflag, size = 0x4, scoped, tag = 'scoped memory for tpu_custom_call.1']
    #allocation10 [shape = 'u8[512]{0}', space=smem, size = 0x200, scoped, tag = 'input window, operand 3, single buffered']
    #allocation11 [shape = 'u8[512]{0}', space=smem, size = 0x200, scoped, tag = 'input window, operand 4, single buffered']
    #allocation12 [shape = 's32[1]{0}', space=sflag, size = 0x4, scoped, tag = 'scoped memory for tpu_custom_call.1']
    #allocation13 [shape = 'u8[512]{0}', space=smem, size = 0x200, scoped, tag = 'input window, operand 5, single buffered']
    #allocation14 [shape = 'u8[8192]{0}', space=vmem, size = 0x2000, scoped, tag = 'output window, operand 0, single buffered']
    %13 = vsyncpa [#allocation4], 0
    %14 = vsyncpa [#allocation6], 0
    %15 = vsyncpa [#allocation9], 0
    %16 = vsyncpa [#allocation12], 0
    %17 = vsyncpa [#allocation5], 0
    // Predicated region
    $region2: #{tpu_custom_call.1} parent=1 // pred_check
      _
    $region3: #{tpu_custom_call.1} parent=1 // pred_check_branch
      %19 = sbr.rel (0) target = $region5
    $region4: #{tpu_custom_call.1} parent=1 // pred_region
      %s21 = ssub.s32 1024, 1024
      %22 = vsyncadd [#allocation4], %s21
      %s23 = sshll.u32 [#allocation3], 4
      %s24 = int_to_ptr.vmem [resolvable:$true] %s23
      %29 = dma.hbm_to_vmem [thread:$0]  %s0, 1024, %s24, [#allocation4], 128, 128, 8
    $region5: #{tpu_custom_call.1} parent=1 // pred_fallthru
      _
    // Predicated region
    $region6: #{tpu_custom_call.1} parent=1 // pred_check
      _
    $region7: #{tpu_custom_call.1} parent=1 // pred_check_branch
      %31 = sbr.rel (0) target = $region9
    $region8: #{tpu_custom_call.1} parent=1 // pred_region
      %s33 = ssub.s32 16, 16
      %34 = vsyncadd [#allocation6], %s33
      %s36 = sshll.u32 %s1, 4
      %s37 = int_to_ptr.vmem [resolvable:$true] %s36
      %39 = dma.vmem_to_smem %s37, 16, [#allocation7], [#allocation6]
    $region9: #{tpu_custom_call.1} parent=1 // pred_fallthru
      _
    // Predicated region
    $region10: #{tpu_custom_call.1} parent=1 // pred_check
      _
    $region11: #{tpu_custom_call.1} parent=1 // pred_check_branch
      %41 = sbr.rel (0) target = $region13
    $region12: #{tpu_custom_call.1} parent=1 // pred_region
      %s43 = ssub.s32 16, 16
      %44 = vsyncadd [#allocation9], %s43
      %s46 = sshll.u32 %s2, 4
      %s47 = int_to_ptr.vmem [resolvable:$true] %s46
      %49 = dma.vmem_to_smem %s47, 16, [#allocation8], [#allocation9]
    $region13: #{tpu_custom_call.1} parent=1 // pred_fallthru
      _
    // Predicated region
    $region14: #{tpu_custom_call.1} parent=1 // pred_check
      _
    $region15: #{tpu_custom_call.1} parent=1 // pred_check_branch
      %51 = sbr.rel (0) target = $region17
    $region16: #{tpu_custom_call.1} parent=1 // pred_region
      %s53 = ssub.s32 16, 16
      %54 = vsyncadd [#allocation9], %s53
      %s56 = sshll.u32 %s3, 4
      %s57 = int_to_ptr.vmem [resolvable:$true] %s56
      %59 = dma.vmem_to_smem %s57, 16, [#allocation10], [#allocation9]
    $region17: #{tpu_custom_call.1} parent=1 // pred_fallthru
      _
    // Predicated region
    $region18: #{tpu_custom_call.1} parent=1 // pred_check
      _
    $region19: #{tpu_custom_call.1} parent=1 // pred_check_branch
      %61 = sbr.rel (0) target = $region21
    $region20: #{tpu_custom_call.1} parent=1 // pred_region
      %s63 = ssub.s32 16, 16
      %64 = vsyncadd [#allocation12], %s63
      %s66 = sshll.u32 %s4, 4
      %s67 = int_to_ptr.vmem [resolvable:$true] %s66
      %69 = dma.vmem_to_smem %s67, 16, [#allocation11], [#allocation12]
    $region21: #{tpu_custom_call.1} parent=1 // pred_fallthru
      _
    // Predicated region
    $region22: #{tpu_custom_call.1} parent=1 // pred_check
      _
    $region23: #{tpu_custom_call.1} parent=1 // pred_check_branch
      %71 = sbr.rel (0) target = $region25
    $region24: #{tpu_custom_call.1} parent=1 // pred_region
      %s73 = ssub.s32 16, 16
      %74 = vsyncadd [#allocation12], %s73
      %s76 = sshll.u32 %s5, 4
      %s77 = int_to_ptr.vmem [resolvable:$true] %s76
      %79 = dma.vmem_to_smem %s77, 16, [#allocation13], [#allocation12]
    $region25: #{tpu_custom_call.1} parent=1 // pred_fallthru
      _
    // Predicated region
    $region26: #{tpu_custom_call.1} parent=1 // pred_check
      _
    $region27: #{tpu_custom_call.1} parent=1 // pred_check_branch
      %81 = sbr.rel (0) target = $region29
    $region28: #{tpu_custom_call.1} parent=1 // pred_region
      _
    $region29: #{tpu_custom_call.1} parent=1 // pred_fallthru
      _
    // Predicated region
    $region30: #{tpu_custom_call.1} parent=1 // pred_check
      _
    $region31: #{tpu_custom_call.1} parent=1 // pred_check_branch
      %83 = sbr.rel (0) target = $region33
    $region32: #{tpu_custom_call.1} parent=1 // pred_region
      %84 = dma.done [#allocation4], 1024
    $region33: #{tpu_custom_call.1} parent=1 // pred_fallthru
      _
    // Predicated region
    $region34: #{tpu_custom_call.1} parent=1 // pred_check
      _
    $region35: #{tpu_custom_call.1} parent=1 // pred_check_branch
      %86 = sbr.rel (0) target = $region37
    $region36: #{tpu_custom_call.1} parent=1 // pred_region
      %87 = dma.done [#allocation6], 16
    $region37: #{tpu_custom_call.1} parent=1 // pred_fallthru
      _
    // Predicated region
    $region38: #{tpu_custom_call.1} parent=1 // pred_check
      _
    $region39: #{tpu_custom_call.1} parent=1 // pred_check_branch
      %89 = sbr.rel (0) target = $region41
    $region40: #{tpu_custom_call.1} parent=1 // pred_region
      %90 = dma.done [#allocation9], 16
    $region41: #{tpu_custom_call.1} parent=1 // pred_fallthru
      _
    // Predicated region
    $region42: #{tpu_custom_call.1} parent=1 // pred_check
      _
    $region43: #{tpu_custom_call.1} parent=1 // pred_check_branch
      %92 = sbr.rel (0) target = $region45
    $region44: #{tpu_custom_call.1} parent=1 // pred_region
      %93 = dma.done [#allocation9], 16
    $region45: #{tpu_custom_call.1} parent=1 // pred_fallthru
      _
    // Predicated region
    $region46: #{tpu_custom_call.1} parent=1 // pred_check
      _
    $region47: #{tpu_custom_call.1} parent=1 // pred_check_branch
      %95 = sbr.rel (0) target = $region49
    $region48: #{tpu_custom_call.1} parent=1 // pred_region
      %96 = dma.done [#allocation12], 16
    $region49: #{tpu_custom_call.1} parent=1 // pred_fallthru
      _
    // Predicated region
    $region50: #{tpu_custom_call.1} parent=1 // pred_check
      _
    $region51: #{tpu_custom_call.1} parent=1 // pred_check_branch
      %98 = sbr.rel (0) target = $region53
    $region52: #{tpu_custom_call.1} parent=1 // pred_region
      %99 = dma.done [#allocation12], 16
    $region53: #{tpu_custom_call.1} parent=1 // pred_fallthru
      _
    %100 = sfence
    %v101 = vld [vmem:[#allocation3] sm:$0xff]
    %v102 = vld [vmem:[#allocation3 + $0x8] sm:$0xff]
    %s103 = scalar_lea.vmem [#allocation3], 16
    %v104 = vld [vmem:[%s103] sm:$0xff]
    %v105 = vld [vmem:[%s103 + $0x8] sm:$0xff]
    %s106 = scalar_lea.vmem [#allocation3], 32
    %v107 = vld [vmem:[%s106] sm:$0xff]
    %v108 = vld [vmem:[%s106 + $0x8] sm:$0xff]
    %s109 = scalar_lea.vmem [#allocation3], 48
    %v110 = vld [vmem:[%s109] sm:$0xff]
    %v111 = vld [vmem:[%s109 + $0x8] sm:$0xff]
    %s112 = sld [smem:[#allocation8]]
    %v113 = vstv %s112
    %s114 = sld [smem:[#allocation7]]
    %v115 = vstv %s114
    %v116 = vmul.f32 %v115, %v101
    %v117 = vmul.f32 %v115, %v102
    %v118 = vadd.f32 %v113, %v116
    %v119 = vadd.f32 %v113, %v117
    %s120 = sld [smem:[#allocation7 + $0x1]]
    %v121 = vstv %s120
    %v122 = vmul.f32 %v121, %v101
    %v123 = vmul.f32 %v121, %v102
    %vm126 = vcmask 1046528
    %v127 = vrot.slane %v122, 1
    %v128 = vrot.slane %v123, 1
    %v129 = vsel %vm126, %v127, %v128
    %v132 = vadd.f32 %v118, %v129
    %v133 = vadd.f32 %v119, %v128
    %s134 = sld [smem:[#allocation7 + $0x2]]
    %v135 = vstv %s134
    %v136 = vmul.f32 %v135, %v101
    %v137 = vmul.f32 %v135, %v102
    %vm140 = vcmask 1045504
    %v141 = vrot.slane %v136, 2
    %v142 = vrot.slane %v137, 2
    %v143 = vsel %vm140, %v141, %v142
    %v146 = vadd.f32 %v132, %v143
    %v147 = vadd.f32 %v133, %v142
    %s148 = sld [smem:[#allocation7 + $0x3]]
    %v149 = vstv %s148
    %v150 = vmul.f32 %v149, %v104
    %v151 = vmul.f32 %v149, %v105
    %v152 = vadd.f32 %v146, %v150
    %v153 = vadd.f32 %v147, %v151
    %s154 = sld [smem:[#allocation7 + $0x4]]
    %v155 = vstv %s154
    %v156 = vmul.f32 %v155, %v104
    %v157 = vmul.f32 %v155, %v105
    %v160 = vrot.slane %v156, 1
    %v161 = vrot.slane %v157, 1
    %v162 = vsel %vm126, %v160, %v161
    %v165 = vadd.f32 %v152, %v162
    %v166 = vadd.f32 %v153, %v161
    %s167 = sld [smem:[#allocation7 + $0x5]]
    %v168 = vstv %s167
    %v169 = vmul.f32 %v168, %v104
    %v170 = vmul.f32 %v168, %v105
    %v173 = vrot.slane %v169, 2
    %v174 = vrot.slane %v170, 2
    %v175 = vsel %vm140, %v173, %v174
    %v178 = vadd.f32 %v165, %v175
    %v179 = vadd.f32 %v166, %v174
    %s180 = sld [smem:[#allocation7 + $0x6]]
    %v181 = vstv %s180
    %v182 = vmul.f32 %v181, %v107
    %v183 = vmul.f32 %v181, %v108
    %v184 = vadd.f32 %v178, %v182
    %v185 = vadd.f32 %v179, %v183
    %s186 = sld [smem:[#allocation7 + $0x7]]
    %v187 = vstv %s186
    %v188 = vmul.f32 %v187, %v107
    %v189 = vmul.f32 %v187, %v108
    %v192 = vrot.slane %v188, 1
    %v193 = vrot.slane %v189, 1
    %v194 = vsel %vm126, %v192, %v193
    %v197 = vadd.f32 %v184, %v194
    %v198 = vadd.f32 %v185, %v193
    %s199 = sld [smem:[#allocation7 + $0x8]]
    %v200 = vstv %s199
    %v201 = vmul.f32 %v200, %v107
    %v202 = vmul.f32 %v200, %v108
    %v205 = vrot.slane %v201, 2
    %v206 = vrot.slane %v202, 2
    %v207 = vsel %vm140, %v205, %v206
    %v210 = vadd.f32 %v197, %v207
    %v211 = vadd.f32 %v198, %v206
    %s212 = sld [smem:[#allocation7 + $0x9]]
    %v213 = vstv %s212
    %v214 = vmul.f32 %v213, %v110
    %v215 = vmul.f32 %v213, %v111
    %v216 = vadd.f32 %v210, %v214
    %v217 = vadd.f32 %v211, %v215
    %s218 = sld [smem:[#allocation7 + $0xa]]
    %v219 = vstv %s218
    %v220 = vmul.f32 %v219, %v110
    %v221 = vmul.f32 %v219, %v111
    %v224 = vrot.slane %v220, 1
    %v225 = vrot.slane %v221, 1
    %v226 = vsel %vm126, %v224, %v225
    %v229 = vadd.f32 %v216, %v226
    %v230 = vadd.f32 %v217, %v225
    %s231 = sld [smem:[#allocation7 + $0xb]]
    %v232 = vstv %s231
    %v233 = vmul.f32 %v232, %v110
    %v234 = vmul.f32 %v232, %v111
    %v237 = vrot.slane %v233, 2
    %v238 = vrot.slane %v234, 2
    %v239 = vsel %vm140, %v237, %v238
    %v242 = vadd.f32 %v229, %v239
    %v243 = vadd.f32 %v230, %v238
    %v244 = vmax.f32 %v242, 0.0
    %v245 = vmax.f32 %v243, 0.0
    %s246 = sld [smem:[#allocation8 + $0x1]]
    %v247 = vstv %s246
    %s248 = sld [smem:[#allocation7 + $0xc]]
    %v249 = vstv %s248
    %v250 = vmul.f32 %v249, %v101
    %v251 = vmul.f32 %v249, %v102
    %v252 = vadd.f32 %v247, %v250
    %v253 = vadd.f32 %v247, %v251
    %s254 = sld [smem:[#allocation7 + $0xd]]
    %v255 = vstv %s254
    %v256 = vmul.f32 %v255, %v101
    %v257 = vmul.f32 %v255, %v102
    %v260 = vrot.slane %v256, 1
    %v261 = vrot.slane %v257, 1
    %v262 = vsel %vm126, %v260, %v261
    %v265 = vadd.f32 %v252, %v262
    %v266 = vadd.f32 %v253, %v261
    %s267 = sld [smem:[#allocation7 + $0xe]]
    %v268 = vstv %s267
    %v269 = vmul.f32 %v268, %v101
    %v270 = vmul.f32 %v268, %v102
    %v273 = vrot.slane %v269, 2
    %v274 = vrot.slane %v270, 2
    %v275 = vsel %vm140, %v273, %v274
    %v278 = vadd.f32 %v265, %v275
    %v279 = vadd.f32 %v266, %v274
    %s280 = sld [smem:[#allocation7 + $0xf]]
    %v281 = vstv %s280
    %v282 = vmul.f32 %v281, %v104
    %v283 = vmul.f32 %v281, %v105
    %v284 = vadd.f32 %v278, %v282
    %v285 = vadd.f32 %v279, %v283
    %s286 = sld [smem:[#allocation7 + $0x10]]
    %v287 = vstv %s286
    %v288 = vmul.f32 %v287, %v104
    %v289 = vmul.f32 %v287, %v105
    %v292 = vrot.slane %v288, 1
    %v293 = vrot.slane %v289, 1
    %v294 = vsel %vm126, %v292, %v293
    %v297 = vadd.f32 %v284, %v294
    %v298 = vadd.f32 %v285, %v293
    %s299 = sld [smem:[#allocation7 + $0x11]]
    %v300 = vstv %s299
    %v301 = vmul.f32 %v300, %v104
    %v302 = vmul.f32 %v300, %v105
    %v305 = vrot.slane %v301, 2
    %v306 = vrot.slane %v302, 2
    %v307 = vsel %vm140, %v305, %v306
    %v310 = vadd.f32 %v297, %v307
    %v311 = vadd.f32 %v298, %v306
    %s312 = sld [smem:[#allocation7 + $0x12]]
    %v313 = vstv %s312
    %v314 = vmul.f32 %v313, %v107
    %v315 = vmul.f32 %v313, %v108
    %v316 = vadd.f32 %v310, %v314
    %v317 = vadd.f32 %v311, %v315
    %s318 = sld [smem:[#allocation7 + $0x13]]
    %v319 = vstv %s318
    %v320 = vmul.f32 %v319, %v107
    %v321 = vmul.f32 %v319, %v108
    %v324 = vrot.slane %v320, 1
    %v325 = vrot.slane %v321, 1
    %v326 = vsel %vm126, %v324, %v325
    %v329 = vadd.f32 %v316, %v326
    %v330 = vadd.f32 %v317, %v325
    %s331 = sld [smem:[#allocation7 + $0x14]]
    %v332 = vstv %s331
    %v333 = vmul.f32 %v332, %v107
    %v334 = vmul.f32 %v332, %v108
    %v337 = vrot.slane %v333, 2
    %v338 = vrot.slane %v334, 2
    %v339 = vsel %vm140, %v337, %v338
    %v342 = vadd.f32 %v329, %v339
    %v343 = vadd.f32 %v330, %v338
    %s344 = sld [smem:[#allocation7 + $0x15]]
    %v345 = vstv %s344
    %v346 = vmul.f32 %v345, %v110
    %v347 = vmul.f32 %v345, %v111
    %v348 = vadd.f32 %v342, %v346
    %v349 = vadd.f32 %v343, %v347
    %s350 = sld [smem:[#allocation7 + $0x16]]
    %v351 = vstv %s350
    %v352 = vmul.f32 %v351, %v110
    %v353 = vmul.f32 %v351, %v111
    %v356 = vrot.slane %v352, 1
    %v357 = vrot.slane %v353, 1
    %v358 = vsel %vm126, %v356, %v357
    %v361 = vadd.f32 %v348, %v358
    %v362 = vadd.f32 %v349, %v357
    %s363 = sld [smem:[#allocation7 + $0x17]]
    %v364 = vstv %s363
    %v365 = vmul.f32 %v364, %v110
    %v366 = vmul.f32 %v364, %v111
    %v369 = vrot.slane %v365, 2
    %v370 = vrot.slane %v366, 2
    %v371 = vsel %vm140, %v369, %v370
    %v374 = vadd.f32 %v361, %v371
    %v375 = vadd.f32 %v362, %v370
    %v376 = vmax.f32 %v374, 0.0
    %v377 = vmax.f32 %v375, 0.0
    %s378 = sld [smem:[#allocation8 + $0x2]]
    %v379 = vstv %s378
    %s380 = sld [smem:[#allocation7 + $0x18]]
    %v381 = vstv %s380
    %v382 = vmul.f32 %v381, %v101
    %v383 = vmul.f32 %v381, %v102
    %v384 = vadd.f32 %v379, %v382
    %v385 = vadd.f32 %v379, %v383
    %s386 = sld [smem:[#allocation7 + $0x19]]
    %v387 = vstv %s386
    %v388 = vmul.f32 %v387, %v101
    %v389 = vmul.f32 %v387, %v102
    %v392 = vrot.slane %v388, 1
    %v393 = vrot.slane %v389, 1
    %v394 = vsel %vm126, %v392, %v393
    %v397 = vadd.f32 %v384, %v394
    %v398 = vadd.f32 %v385, %v393
    %s399 = sld [smem:[#allocation7 + $0x1a]]
    %v400 = vstv %s399
    %v401 = vmul.f32 %v400, %v101
    %v402 = vmul.f32 %v400, %v102
    %v405 = vrot.slane %v401, 2
    %v406 = vrot.slane %v402, 2
    %v407 = vsel %vm140, %v405, %v406
    %v410 = vadd.f32 %v397, %v407
    %v411 = vadd.f32 %v398, %v406
    %s412 = sld [smem:[#allocation7 + $0x1b]]
    %v413 = vstv %s412
    %v414 = vmul.f32 %v413, %v104
    %v415 = vmul.f32 %v413, %v105
    %v416 = vadd.f32 %v410, %v414
    %v417 = vadd.f32 %v411, %v415
    %s418 = sld [smem:[#allocation7 + $0x1c]]
    %v419 = vstv %s418
    %v420 = vmul.f32 %v419, %v104
    %v421 = vmul.f32 %v419, %v105
    %v424 = vrot.slane %v420, 1
    %v425 = vrot.slane %v421, 1
    %v426 = vsel %vm126, %v424, %v425
    %v429 = vadd.f32 %v416, %v426
    %v430 = vadd.f32 %v417, %v425
    %s431 = sld [smem:[#allocation7 + $0x1d]]
    %v432 = vstv %s431
    %v433 = vmul.f32 %v432, %v104
    %v434 = vmul.f32 %v432, %v105
    %v437 = vrot.slane %v433, 2
    %v438 = vrot.slane %v434, 2
    %v439 = vsel %vm140, %v437, %v438
    %v442 = vadd.f32 %v429, %v439
    %v443 = vadd.f32 %v430, %v438
    %s444 = sld [smem:[#allocation7 + $0x1e]]
    %v445 = vstv %s444
    %v446 = vmul.f32 %v445, %v107
    %v447 = vmul.f32 %v445, %v108
    %v448 = vadd.f32 %v442, %v446
    %v449 = vadd.f32 %v443, %v447
    %s450 = sld [smem:[#allocation7 + $0x1f]]
    %v451 = vstv %s450
    %v452 = vmul.f32 %v451, %v107
    %v453 = vmul.f32 %v451, %v108
    %v456 = vrot.slane %v452, 1
    %v457 = vrot.slane %v453, 1
    %v458 = vsel %vm126, %v456, %v457
    %v461 = vadd.f32 %v448, %v458
    %v462 = vadd.f32 %v449, %v457
    %s463 = sld [smem:[#allocation7 + $0x20]]
    %v464 = vstv %s463
    %v465 = vmul.f32 %v464, %v107
    %v466 = vmul.f32 %v464, %v108
    %v469 = vrot.slane %v465, 2
    %v470 = vrot.slane %v466, 2
    %v471 = vsel %vm140, %v469, %v470
    %v474 = vadd.f32 %v461, %v471
    %v475 = vadd.f32 %v462, %v470
    %s476 = sld [smem:[#allocation7 + $0x21]]
    %v477 = vstv %s476
    %v478 = vmul.f32 %v477, %v110
    %v479 = vmul.f32 %v477, %v111
    %v480 = vadd.f32 %v474, %v478
    %v481 = vadd.f32 %v475, %v479
    %s482 = sld [smem:[#allocation7 + $0x22]]
    %v483 = vstv %s482
    %v484 = vmul.f32 %v483, %v110
    %v485 = vmul.f32 %v483, %v111
    %v488 = vrot.slane %v484, 1
    %v489 = vrot.slane %v485, 1
    %v490 = vsel %vm126, %v488, %v489
    %v493 = vadd.f32 %v480, %v490
    %v494 = vadd.f32 %v481, %v489
    %s495 = sld [smem:[#allocation7 + $0x23]]
    %v496 = vstv %s495
    %v497 = vmul.f32 %v496, %v110
    %v498 = vmul.f32 %v496, %v111
    %v501 = vrot.slane %v497, 2
    %v502 = vrot.slane %v498, 2
    %v503 = vsel %vm140, %v501, %v502
    %v506 = vadd.f32 %v493, %v503
    %v507 = vadd.f32 %v494, %v502
    %v508 = vmax.f32 %v506, 0.0
    %v509 = vmax.f32 %v507, 0.0
    %s510 = sld [smem:[#allocation8 + $0x3]]
    %v511 = vstv %s510
    %s512 = sld [smem:[#allocation7 + $0x24]]
    %v513 = vstv %s512
    %v514 = vmul.f32 %v513, %v101
    %v515 = vmul.f32 %v513, %v102
    %v516 = vadd.f32 %v511, %v514
    %v517 = vadd.f32 %v511, %v515
    %s518 = sld [smem:[#allocation7 + $0x25]]
    %v519 = vstv %s518
    %v520 = vmul.f32 %v519, %v101
    %v521 = vmul.f32 %v519, %v102
    %v524 = vrot.slane %v520, 1
    %v525 = vrot.slane %v521, 1
    %v526 = vsel %vm126, %v524, %v525
    %v529 = vadd.f32 %v516, %v526
    %v530 = vadd.f32 %v517, %v525
    %s531 = sld [smem:[#allocation7 + $0x26]]
    %v532 = vstv %s531
    %v533 = vmul.f32 %v532, %v101
    %v534 = vmul.f32 %v532, %v102
    %v537 = vrot.slane %v533, 2
    %v538 = vrot.slane %v534, 2
    %v539 = vsel %vm140, %v537, %v538
    %v542 = vadd.f32 %v529, %v539
    %v543 = vadd.f32 %v530, %v538
    %s544 = sld [smem:[#allocation7 + $0x27]]
    %v545 = vstv %s544
    %v546 = vmul.f32 %v545, %v104
    %v547 = vmul.f32 %v545, %v105
    %v548 = vadd.f32 %v542, %v546
    %v549 = vadd.f32 %v543, %v547
    %s550 = sld [smem:[#allocation7 + $0x28]]
    %v551 = vstv %s550
    %v552 = vmul.f32 %v551, %v104
    %v553 = vmul.f32 %v551, %v105
    %v556 = vrot.slane %v552, 1
    %v557 = vrot.slane %v553, 1
    %v558 = vsel %vm126, %v556, %v557
    %v561 = vadd.f32 %v548, %v558
    %v562 = vadd.f32 %v549, %v557
    %s563 = sld [smem:[#allocation7 + $0x29]]
    %v564 = vstv %s563
    %v565 = vmul.f32 %v564, %v104
    %v566 = vmul.f32 %v564, %v105
    %v569 = vrot.slane %v565, 2
    %v570 = vrot.slane %v566, 2
    %v571 = vsel %vm140, %v569, %v570
    %v574 = vadd.f32 %v561, %v571
    %v575 = vadd.f32 %v562, %v570
    %s576 = sld [smem:[#allocation7 + $0x2a]]
    %v577 = vstv %s576
    %v578 = vmul.f32 %v577, %v107
    %v579 = vmul.f32 %v577, %v108
    %v580 = vadd.f32 %v574, %v578
    %v581 = vadd.f32 %v575, %v579
    %s582 = sld [smem:[#allocation7 + $0x2b]]
    %v583 = vstv %s582
    %v584 = vmul.f32 %v583, %v107
    %v585 = vmul.f32 %v583, %v108
    %v588 = vrot.slane %v584, 1
    %v589 = vrot.slane %v585, 1
    %v590 = vsel %vm126, %v588, %v589
    %v593 = vadd.f32 %v580, %v590
    %v594 = vadd.f32 %v581, %v589
    %s595 = sld [smem:[#allocation7 + $0x2c]]
    %v596 = vstv %s595
    %v597 = vmul.f32 %v596, %v107
    %v598 = vmul.f32 %v596, %v108
    %v601 = vrot.slane %v597, 2
    %v602 = vrot.slane %v598, 2
    %v603 = vsel %vm140, %v601, %v602
    %v606 = vadd.f32 %v593, %v603
    %v607 = vadd.f32 %v594, %v602
    %s608 = sld [smem:[#allocation7 + $0x2d]]
    %v609 = vstv %s608
    %v610 = vmul.f32 %v609, %v110
    %v611 = vmul.f32 %v609, %v111
    %v612 = vadd.f32 %v606, %v610
    %v613 = vadd.f32 %v607, %v611
    %s614 = sld [smem:[#allocation7 + $0x2e]]
    %v615 = vstv %s614
    %v616 = vmul.f32 %v615, %v110
    %v617 = vmul.f32 %v615, %v111
    %v620 = vrot.slane %v616, 1
    %v621 = vrot.slane %v617, 1
    %v622 = vsel %vm126, %v620, %v621
    %v625 = vadd.f32 %v612, %v622
    %v626 = vadd.f32 %v613, %v621
    %s627 = sld [smem:[#allocation7 + $0x2f]]
    %v628 = vstv %s627
    %v629 = vmul.f32 %v628, %v110
    %v630 = vmul.f32 %v628, %v111
    %v633 = vrot.slane %v629, 2
    %v634 = vrot.slane %v630, 2
    %v635 = vsel %vm140, %v633, %v634
    %v638 = vadd.f32 %v625, %v635
    %v639 = vadd.f32 %v626, %v634
    %v640 = vmax.f32 %v638, 0.0
    %v641 = vmax.f32 %v639, 0.0
    %s642 = sld [smem:[#allocation8 + $0x4]]
    %v643 = vstv %s642
    %s644 = sld [smem:[#allocation7 + $0x30]]
    %v645 = vstv %s644
    %v646 = vmul.f32 %v645, %v101
    %v647 = vmul.f32 %v645, %v102
    %v648 = vadd.f32 %v643, %v646
    %v649 = vadd.f32 %v643, %v647
    %s650 = sld [smem:[#allocation7 + $0x31]]
    %v651 = vstv %s650
    %v652 = vmul.f32 %v651, %v101
    %v653 = vmul.f32 %v651, %v102
    %v656 = vrot.slane %v652, 1
    %v657 = vrot.slane %v653, 1
    %v658 = vsel %vm126, %v656, %v657
    %v661 = vadd.f32 %v648, %v658
    %v662 = vadd.f32 %v649, %v657
    %s663 = sld [smem:[#allocation7 + $0x32]]
    %v664 = vstv %s663
    %v665 = vmul.f32 %v664, %v101
    %v666 = vmul.f32 %v664, %v102
    %v669 = vrot.slane %v665, 2
    %v670 = vrot.slane %v666, 2
    %v671 = vsel %vm140, %v669, %v670
    %v674 = vadd.f32 %v661, %v671
    %v675 = vadd.f32 %v662, %v670
    %s676 = sld [smem:[#allocation7 + $0x33]]
    %v677 = vstv %s676
    %v678 = vmul.f32 %v677, %v104
    %v679 = vmul.f32 %v677, %v105
    %v680 = vadd.f32 %v674, %v678
    %v681 = vadd.f32 %v675, %v679
    %s682 = sld [smem:[#allocation7 + $0x34]]
    %v683 = vstv %s682
    %v684 = vmul.f32 %v683, %v104
    %v685 = vmul.f32 %v683, %v105
    %v688 = vrot.slane %v684, 1
    %v689 = vrot.slane %v685, 1
    %v690 = vsel %vm126, %v688, %v689
    %v693 = vadd.f32 %v680, %v690
    %v694 = vadd.f32 %v681, %v689
    %s695 = sld [smem:[#allocation7 + $0x35]]
    %v696 = vstv %s695
    %v697 = vmul.f32 %v696, %v104
    %v698 = vmul.f32 %v696, %v105
    %v701 = vrot.slane %v697, 2
    %v702 = vrot.slane %v698, 2
    %v703 = vsel %vm140, %v701, %v702
    %v706 = vadd.f32 %v693, %v703
    %v707 = vadd.f32 %v694, %v702
    %s708 = sld [smem:[#allocation7 + $0x36]]
    %v709 = vstv %s708
    %v710 = vmul.f32 %v709, %v107
    %v711 = vmul.f32 %v709, %v108
    %v712 = vadd.f32 %v706, %v710
    %v713 = vadd.f32 %v707, %v711
    %s714 = sld [smem:[#allocation7 + $0x37]]
    %v715 = vstv %s714
    %v716 = vmul.f32 %v715, %v107
    %v717 = vmul.f32 %v715, %v108
    %v720 = vrot.slane %v716, 1
    %v721 = vrot.slane %v717, 1
    %v722 = vsel %vm126, %v720, %v721
    %v725 = vadd.f32 %v712, %v722
    %v726 = vadd.f32 %v713, %v721
    %s727 = sld [smem:[#allocation7 + $0x38]]
    %v728 = vstv %s727
    %v729 = vmul.f32 %v728, %v107
    %v730 = vmul.f32 %v728, %v108
    %v733 = vrot.slane %v729, 2
    %v734 = vrot.slane %v730, 2
    %v735 = vsel %vm140, %v733, %v734
    %v738 = vadd.f32 %v725, %v735
    %v739 = vadd.f32 %v726, %v734
    %s740 = sld [smem:[#allocation7 + $0x39]]
    %v741 = vstv %s740
    %v742 = vmul.f32 %v741, %v110
    %v743 = vmul.f32 %v741, %v111
    %v744 = vadd.f32 %v738, %v742
    %v745 = vadd.f32 %v739, %v743
    %s746 = sld [smem:[#allocation7 + $0x3a]]
    %v747 = vstv %s746
    %v748 = vmul.f32 %v747, %v110
    %v749 = vmul.f32 %v747, %v111
    %v752 = vrot.slane %v748, 1
    %v753 = vrot.slane %v749, 1
    %v754 = vsel %vm126, %v752, %v753
    %v757 = vadd.f32 %v744, %v754
    %v758 = vadd.f32 %v745, %v753
    %s759 = sld [smem:[#allocation7 + $0x3b]]
    %v760 = vstv %s759
    %v761 = vmul.f32 %v760, %v110
    %v762 = vmul.f32 %v760, %v111
    %v765 = vrot.slane %v761, 2
    %v766 = vrot.slane %v762, 2
    %v767 = vsel %vm140, %v765, %v766
    %v770 = vadd.f32 %v757, %v767
    %v771 = vadd.f32 %v758, %v766
    %v772 = vmax.f32 %v770, 0.0
    %v773 = vmax.f32 %v771, 0.0
    %s774 = sld [smem:[#allocation8 + $0x5]]
    %v775 = vstv %s774
    %s776 = sld [smem:[#allocation7 + $0x3c]]
    %v777 = vstv %s776
    %v778 = vmul.f32 %v777, %v101
    %v779 = vmul.f32 %v777, %v102
    %v780 = vadd.f32 %v775, %v778
    %v781 = vadd.f32 %v775, %v779
    %s782 = sld [smem:[#allocation7 + $0x3d]]
    %v783 = vstv %s782
    %v784 = vmul.f32 %v783, %v101
    %v785 = vmul.f32 %v783, %v102
    %v788 = vrot.slane %v784, 1
    %v789 = vrot.slane %v785, 1
    %v790 = vsel %vm126, %v788, %v789
    %v793 = vadd.f32 %v780, %v790
    %v794 = vadd.f32 %v781, %v789
    %s795 = sld [smem:[#allocation7 + $0x3e]]
    %v796 = vstv %s795
    %v797 = vmul.f32 %v796, %v101
    %v798 = vmul.f32 %v796, %v102
    %v801 = vrot.slane %v797, 2
    %v802 = vrot.slane %v798, 2
    %v803 = vsel %vm140, %v801, %v802
    %v806 = vadd.f32 %v793, %v803
    %v807 = vadd.f32 %v794, %v802
    %s808 = sld [smem:[#allocation7 + $0x3f]]
    %v809 = vstv %s808
    %v810 = vmul.f32 %v809, %v104
    %v811 = vmul.f32 %v809, %v105
    %v812 = vadd.f32 %v806, %v810
    %v813 = vadd.f32 %v807, %v811
    %s814 = sld [smem:[#allocation7 + $0x40]]
    %v815 = vstv %s814
    %v816 = vmul.f32 %v815, %v104
    %v817 = vmul.f32 %v815, %v105
    %v820 = vrot.slane %v816, 1
    %v821 = vrot.slane %v817, 1
    %v822 = vsel %vm126, %v820, %v821
    %v825 = vadd.f32 %v812, %v822
    %v826 = vadd.f32 %v813, %v821
    %s827 = sld [smem:[#allocation7 + $0x41]]
    %v828 = vstv %s827
    %v829 = vmul.f32 %v828, %v104
    %v830 = vmul.f32 %v828, %v105
    %v833 = vrot.slane %v829, 2
    %v834 = vrot.slane %v830, 2
    %v835 = vsel %vm140, %v833, %v834
    %v838 = vadd.f32 %v825, %v835
    %v839 = vadd.f32 %v826, %v834
    %s840 = sld [smem:[#allocation7 + $0x42]]
    %v841 = vstv %s840
    %v842 = vmul.f32 %v841, %v107
    %v843 = vmul.f32 %v841, %v108
    %v844 = vadd.f32 %v838, %v842
    %v845 = vadd.f32 %v839, %v843
    %s846 = sld [smem:[#allocation7 + $0x43]]
    %v847 = vstv %s846
    %v848 = vmul.f32 %v847, %v107
    %v849 = vmul.f32 %v847, %v108
    %v852 = vrot.slane %v848, 1
    %v853 = vrot.slane %v849, 1
    %v854 = vsel %vm126, %v852, %v853
    %v857 = vadd.f32 %v844, %v854
    %v858 = vadd.f32 %v845, %v853
    %s859 = sld [smem:[#allocation7 + $0x44]]
    %v860 = vstv %s859
    %v861 = vmul.f32 %v860, %v107
    %v862 = vmul.f32 %v860, %v108
    %v865 = vrot.slane %v861, 2
    %v866 = vrot.slane %v862, 2
    %v867 = vsel %vm140, %v865, %v866
    %v870 = vadd.f32 %v857, %v867
    %v871 = vadd.f32 %v858, %v866
    %s872 = sld [smem:[#allocation7 + $0x45]]
    %v873 = vstv %s872
    %v874 = vmul.f32 %v873, %v110
    %v875 = vmul.f32 %v873, %v111
    %v876 = vadd.f32 %v870, %v874
    %v877 = vadd.f32 %v871, %v875
    %s878 = sld [smem:[#allocation7 + $0x46]]
    %v879 = vstv %s878
    %v880 = vmul.f32 %v879, %v110
    %v881 = vmul.f32 %v879, %v111
    %v884 = vrot.slane %v880, 1
    %v885 = vrot.slane %v881, 1
    %v886 = vsel %vm126, %v884, %v885
    %v889 = vadd.f32 %v876, %v886
    %v890 = vadd.f32 %v877, %v885
    %s891 = sld [smem:[#allocation7 + $0x47]]
    %v892 = vstv %s891
    %v893 = vmul.f32 %v892, %v110
    %v894 = vmul.f32 %v892, %v111
    %v897 = vrot.slane %v893, 2
    %v898 = vrot.slane %v894, 2
    %v899 = vsel %vm140, %v897, %v898
    %v902 = vadd.f32 %v889, %v899
    %v903 = vadd.f32 %v890, %v898
    %v904 = vmax.f32 %v902, 0.0
    %v905 = vmax.f32 %v903, 0.0
    %s906 = sld [smem:[#allocation8 + $0x6]]
    %v907 = vstv %s906
    %s908 = sld [smem:[#allocation7 + $0x48]]
    %v909 = vstv %s908
    %v910 = vmul.f32 %v909, %v101
    %v911 = vmul.f32 %v909, %v102
    %v912 = vadd.f32 %v907, %v910
    %v913 = vadd.f32 %v907, %v911
    %s914 = sld [smem:[#allocation7 + $0x49]]
    %v915 = vstv %s914
    %v916 = vmul.f32 %v915, %v101
    %v917 = vmul.f32 %v915, %v102
    %v920 = vrot.slane %v916, 1
    %v921 = vrot.slane %v917, 1
    %v922 = vsel %vm126, %v920, %v921
    %v925 = vadd.f32 %v912, %v922
    %v926 = vadd.f32 %v913, %v921
    %s927 = sld [smem:[#allocation7 + $0x4a]]
    %v928 = vstv %s927
    %v929 = vmul.f32 %v928, %v101
    %v930 = vmul.f32 %v928, %v102
    %v933 = vrot.slane %v929, 2
    %v934 = vrot.slane %v930, 2
    %v935 = vsel %vm140, %v933, %v934
    %v938 = vadd.f32 %v925, %v935
    %v939 = vadd.f32 %v926, %v934
    %s940 = sld [smem:[#allocation7 + $0x4b]]
    %v941 = vstv %s940
    %v942 = vmul.f32 %v941, %v104
    %v943 = vmul.f32 %v941, %v105
    %v944 = vadd.f32 %v938, %v942
    %v945 = vadd.f32 %v939, %v943
    %s946 = sld [smem:[#allocation7 + $0x4c]]
    %v947 = vstv %s946
    %v948 = vmul.f32 %v947, %v104
    %v949 = vmul.f32 %v947, %v105
    %v952 = vrot.slane %v948, 1
    %v953 = vrot.slane %v949, 1
    %v954 = vsel %vm126, %v952, %v953
    %v957 = vadd.f32 %v944, %v954
    %v958 = vadd.f32 %v945, %v953
    %s959 = sld [smem:[#allocation7 + $0x4d]]
    %v960 = vstv %s959
    %v961 = vmul.f32 %v960, %v104
    %v962 = vmul.f32 %v960, %v105
    %v965 = vrot.slane %v961, 2
    %v966 = vrot.slane %v962, 2
    %v967 = vsel %vm140, %v965, %v966
    %v970 = vadd.f32 %v957, %v967
    %v971 = vadd.f32 %v958, %v966
    %s972 = sld [smem:[#allocation7 + $0x4e]]
    %v973 = vstv %s972
    %v974 = vmul.f32 %v973, %v107
    %v975 = vmul.f32 %v973, %v108
    %v976 = vadd.f32 %v970, %v974
    %v977 = vadd.f32 %v971, %v975
    %s978 = sld [smem:[#allocation7 + $0x4f]]
    %v979 = vstv %s978
    %v980 = vmul.f32 %v979, %v107
    %v981 = vmul.f32 %v979, %v108
    %v984 = vrot.slane %v980, 1
    %v985 = vrot.slane %v981, 1
    %v986 = vsel %vm126, %v984, %v985
    %v989 = vadd.f32 %v976, %v986
    %v990 = vadd.f32 %v977, %v985
    %s991 = sld [smem:[#allocation7 + $0x50]]
    %v992 = vstv %s991
    %v993 = vmul.f32 %v992, %v107
    %v994 = vmul.f32 %v992, %v108
    %v997 = vrot.slane %v993, 2
    %v998 = vrot.slane %v994, 2
    %v999 = vsel %vm140, %v997, %v998
    %v1002 = vadd.f32 %v989, %v999
    %v1003 = vadd.f32 %v990, %v998
    %s1004 = sld [smem:[#allocation7 + $0x51]]
    %v1005 = vstv %s1004
    %v1006 = vmul.f32 %v1005, %v110
    %v1007 = vmul.f32 %v1005, %v111
    %v1008 = vadd.f32 %v1002, %v1006
    %v1009 = vadd.f32 %v1003, %v1007
    %s1010 = sld [smem:[#allocation7 + $0x52]]
    %v1011 = vstv %s1010
    %v1012 = vmul.f32 %v1011, %v110
    %v1013 = vmul.f32 %v1011, %v111
    %v1016 = vrot.slane %v1012, 1
    %v1017 = vrot.slane %v1013, 1
    %v1018 = vsel %vm126, %v1016, %v1017
    %v1021 = vadd.f32 %v1008, %v1018
    %v1022 = vadd.f32 %v1009, %v1017
    %s1023 = sld [smem:[#allocation7 + $0x53]]
    %v1024 = vstv %s1023
    %v1025 = vmul.f32 %v1024, %v110
    %v1026 = vmul.f32 %v1024, %v111
    %v1029 = vrot.slane %v1025, 2
    %v1030 = vrot.slane %v1026, 2
    %v1031 = vsel %vm140, %v1029, %v1030
    %v1034 = vadd.f32 %v1021, %v1031
    %v1035 = vadd.f32 %v1022, %v1030
    %v1036 = vmax.f32 %v1034, 0.0
    %v1037 = vmax.f32 %v1035, 0.0
    %s1038 = sld [smem:[#allocation8 + $0x7]]
    %v1039 = vstv %s1038
    %s1040 = sld [smem:[#allocation7 + $0x54]]
    %v1041 = vstv %s1040
    %v1042 = vmul.f32 %v1041, %v101
    %v1043 = vmul.f32 %v1041, %v102
    %v1044 = vadd.f32 %v1039, %v1042
    %v1045 = vadd.f32 %v1039, %v1043
    %s1046 = sld [smem:[#allocation7 + $0x55]]
    %v1047 = vstv %s1046
    %v1048 = vmul.f32 %v1047, %v101
    %v1049 = vmul.f32 %v1047, %v102
    %v1052 = vrot.slane %v1048, 1
    %v1053 = vrot.slane %v1049, 1
    %v1054 = vsel %vm126, %v1052, %v1053
    %v1057 = vadd.f32 %v1044, %v1054
    %v1058 = vadd.f32 %v1045, %v1053
    %s1059 = sld [smem:[#allocation7 + $0x56]]
    %v1060 = vstv %s1059
    %v1061 = vmul.f32 %v1060, %v101
    %v1062 = vmul.f32 %v1060, %v102
    %v1065 = vrot.slane %v1061, 2
    %v1066 = vrot.slane %v1062, 2
    %v1067 = vsel %vm140, %v1065, %v1066
    %v1070 = vadd.f32 %v1057, %v1067
    %v1071 = vadd.f32 %v1058, %v1066
    %s1072 = sld [smem:[#allocation7 + $0x57]]
    %v1073 = vstv %s1072
    %v1074 = vmul.f32 %v1073, %v104
    %v1075 = vmul.f32 %v1073, %v105
    %v1076 = vadd.f32 %v1070, %v1074
    %v1077 = vadd.f32 %v1071, %v1075
    %s1078 = sld [smem:[#allocation7 + $0x58]]
    %v1079 = vstv %s1078
    %v1080 = vmul.f32 %v1079, %v104
    %v1081 = vmul.f32 %v1079, %v105
    %v1084 = vrot.slane %v1080, 1
    %v1085 = vrot.slane %v1081, 1
    %v1086 = vsel %vm126, %v1084, %v1085
    %v1089 = vadd.f32 %v1076, %v1086
    %v1090 = vadd.f32 %v1077, %v1085
    %s1091 = sld [smem:[#allocation7 + $0x59]]
    %v1092 = vstv %s1091
    %v1093 = vmul.f32 %v1092, %v104
    %v1094 = vmul.f32 %v1092, %v105
    %v1097 = vrot.slane %v1093, 2
    %v1098 = vrot.slane %v1094, 2
    %v1099 = vsel %vm140, %v1097, %v1098
    %v1102 = vadd.f32 %v1089, %v1099
    %v1103 = vadd.f32 %v1090, %v1098
    %s1104 = sld [smem:[#allocation7 + $0x5a]]
    %v1105 = vstv %s1104
    %v1106 = vmul.f32 %v1105, %v107
    %v1107 = vmul.f32 %v1105, %v108
    %v1108 = vadd.f32 %v1102, %v1106
    %v1109 = vadd.f32 %v1103, %v1107
    %s1110 = sld [smem:[#allocation7 + $0x5b]]
    %v1111 = vstv %s1110
    %v1112 = vmul.f32 %v1111, %v107
    %v1113 = vmul.f32 %v1111, %v108
    %v1116 = vrot.slane %v1112, 1
    %v1117 = vrot.slane %v1113, 1
    %v1118 = vsel %vm126, %v1116, %v1117
    %v1121 = vadd.f32 %v1108, %v1118
    %v1122 = vadd.f32 %v1109, %v1117
    %s1123 = sld [smem:[#allocation7 + $0x5c]]
    %v1124 = vstv %s1123
    %v1125 = vmul.f32 %v1124, %v107
    %v1126 = vmul.f32 %v1124, %v108
    %v1129 = vrot.slane %v1125, 2
    %v1130 = vrot.slane %v1126, 2
    %v1131 = vsel %vm140, %v1129, %v1130
    %v1134 = vadd.f32 %v1121, %v1131
    %v1135 = vadd.f32 %v1122, %v1130
    %s1136 = sld [smem:[#allocation7 + $0x5d]]
    %v1137 = vstv %s1136
    %v1138 = vmul.f32 %v1137, %v110
    %v1139 = vmul.f32 %v1137, %v111
    %v1140 = vadd.f32 %v1134, %v1138
    %v1141 = vadd.f32 %v1135, %v1139
    %s1142 = sld [smem:[#allocation7 + $0x5e]]
    %v1143 = vstv %s1142
    %v1144 = vmul.f32 %v1143, %v110
    %v1145 = vmul.f32 %v1143, %v111
    %v1148 = vrot.slane %v1144, 1
    %v1149 = vrot.slane %v1145, 1
    %v1150 = vsel %vm126, %v1148, %v1149
    %v1153 = vadd.f32 %v1140, %v1150
    %v1154 = vadd.f32 %v1141, %v1149
    %s1155 = sld [smem:[#allocation7 + $0x5f]]
    %v1156 = vstv %s1155
    %v1157 = vmul.f32 %v1156, %v110
    %v1158 = vmul.f32 %v1156, %v111
    %v1161 = vrot.slane %v1157, 2
    %v1162 = vrot.slane %v1158, 2
    %v1163 = vsel %vm140, %v1161, %v1162
    %v1166 = vadd.f32 %v1153, %v1163
    %v1167 = vadd.f32 %v1154, %v1162
    %v1168 = vmax.f32 %v1166, 0.0
    %v1169 = vmax.f32 %v1167, 0.0
    %s1170 = sld [smem:[#allocation11]]
    %v1171 = vstv %s1170
    %s1172 = sld [smem:[#allocation10]]
    %v1173 = vstv %s1172
    %v1174 = vmul.f32 %v1173, %v244
    %v1175 = vmul.f32 %v1173, %v245
    %v1176 = vadd.f32 %v1171, %v1174
    %v1177 = vadd.f32 %v1171, %v1175
    %s1178 = sld [smem:[#allocation10 + $0x1]]
    %v1179 = vstv %s1178
    %v1180 = vmul.f32 %v1179, %v376
    %v1181 = vmul.f32 %v1179, %v377
    %v1182 = vadd.f32 %v1176, %v1180
    %v1183 = vadd.f32 %v1177, %v1181
    %s1184 = sld [smem:[#allocation10 + $0x2]]
    %v1185 = vstv %s1184
    %v1186 = vmul.f32 %v1185, %v508
    %v1187 = vmul.f32 %v1185, %v509
    %v1188 = vadd.f32 %v1182, %v1186
    %v1189 = vadd.f32 %v1183, %v1187
    %s1190 = sld [smem:[#allocation10 + $0x3]]
    %v1191 = vstv %s1190
    %v1192 = vmul.f32 %v1191, %v640
    %v1193 = vmul.f32 %v1191, %v641
    %v1194 = vadd.f32 %v1188, %v1192
    %v1195 = vadd.f32 %v1189, %v1193
    %s1196 = sld [smem:[#allocation10 + $0x4]]
    %v1197 = vstv %s1196
    %v1198 = vmul.f32 %v1197, %v772
    %v1199 = vmul.f32 %v1197, %v773
    %v1200 = vadd.f32 %v1194, %v1198
    %v1201 = vadd.f32 %v1195, %v1199
    %s1202 = sld [smem:[#allocation10 + $0x5]]
    %v1203 = vstv %s1202
    %v1204 = vmul.f32 %v1203, %v904
    %v1205 = vmul.f32 %v1203, %v905
    %v1206 = vadd.f32 %v1200, %v1204
    %v1207 = vadd.f32 %v1201, %v1205
    %s1208 = sld [smem:[#allocation10 + $0x6]]
    %v1209 = vstv %s1208
    %v1210 = vmul.f32 %v1209, %v1036
    %v1211 = vmul.f32 %v1209, %v1037
    %v1212 = vadd.f32 %v1206, %v1210
    %v1213 = vadd.f32 %v1207, %v1211
    %s1214 = sld [smem:[#allocation10 + $0x7]]
    %v1215 = vstv %s1214
    %v1216 = vmul.f32 %v1215, %v1168
    %v1217 = vmul.f32 %v1215, %v1169
    %v1218 = vadd.f32 %v1212, %v1216
    %v1219 = vadd.f32 %v1213, %v1217
    %v1220 = vmax.f32 %v1218, 0.0
    %v1221 = vmax.f32 %v1219, 0.0
    %s1222 = sld [smem:[#allocation11 + $0x1]]
    %v1223 = vstv %s1222
    %s1224 = sld [smem:[#allocation10 + $0x8]]
    %v1225 = vstv %s1224
    %v1226 = vmul.f32 %v1225, %v244
    %v1227 = vmul.f32 %v1225, %v245
    %v1228 = vadd.f32 %v1223, %v1226
    %v1229 = vadd.f32 %v1223, %v1227
    %s1230 = sld [smem:[#allocation10 + $0x9]]
    %v1231 = vstv %s1230
    %v1232 = vmul.f32 %v1231, %v376
    %v1233 = vmul.f32 %v1231, %v377
    %v1234 = vadd.f32 %v1228, %v1232
    %v1235 = vadd.f32 %v1229, %v1233
    %s1236 = sld [smem:[#allocation10 + $0xa]]
    %v1237 = vstv %s1236
    %v1238 = vmul.f32 %v1237, %v508
    %v1239 = vmul.f32 %v1237, %v509
    %v1240 = vadd.f32 %v1234, %v1238
    %v1241 = vadd.f32 %v1235, %v1239
    %s1242 = sld [smem:[#allocation10 + $0xb]]
    %v1243 = vstv %s1242
    %v1244 = vmul.f32 %v1243, %v640
    %v1245 = vmul.f32 %v1243, %v641
    %v1246 = vadd.f32 %v1240, %v1244
    %v1247 = vadd.f32 %v1241, %v1245
    %s1248 = sld [smem:[#allocation10 + $0xc]]
    %v1249 = vstv %s1248
    %v1250 = vmul.f32 %v1249, %v772
    %v1251 = vmul.f32 %v1249, %v773
    %v1252 = vadd.f32 %v1246, %v1250
    %v1253 = vadd.f32 %v1247, %v1251
    %s1254 = sld [smem:[#allocation10 + $0xd]]
    %v1255 = vstv %s1254
    %v1256 = vmul.f32 %v1255, %v904
    %v1257 = vmul.f32 %v1255, %v905
    %v1258 = vadd.f32 %v1252, %v1256
    %v1259 = vadd.f32 %v1253, %v1257
    %s1260 = sld [smem:[#allocation10 + $0xe]]
    %v1261 = vstv %s1260
    %v1262 = vmul.f32 %v1261, %v1036
    %v1263 = vmul.f32 %v1261, %v1037
    %v1264 = vadd.f32 %v1258, %v1262
    %v1265 = vadd.f32 %v1259, %v1263
    %s1266 = sld [smem:[#allocation10 + $0xf]]
    %v1267 = vstv %s1266
    %v1268 = vmul.f32 %v1267, %v1168
    %v1269 = vmul.f32 %v1267, %v1169
    %v1270 = vadd.f32 %v1264, %v1268
    %v1271 = vadd.f32 %v1265, %v1269
    %v1272 = vmax.f32 %v1270, 0.0
    %v1273 = vmax.f32 %v1271, 0.0
    %s1274 = sld [smem:[#allocation11 + $0x2]]
    %v1275 = vstv %s1274
    %s1276 = sld [smem:[#allocation10 + $0x10]]
    %v1277 = vstv %s1276
    %v1278 = vmul.f32 %v1277, %v244
    %v1279 = vmul.f32 %v1277, %v245
    %v1280 = vadd.f32 %v1275, %v1278
    %v1281 = vadd.f32 %v1275, %v1279
    %s1282 = sld [smem:[#allocation10 + $0x11]]
    %v1283 = vstv %s1282
    %v1284 = vmul.f32 %v1283, %v376
    %v1285 = vmul.f32 %v1283, %v377
    %v1286 = vadd.f32 %v1280, %v1284
    %v1287 = vadd.f32 %v1281, %v1285
    %s1288 = sld [smem:[#allocation10 + $0x12]]
    %v1289 = vstv %s1288
    %v1290 = vmul.f32 %v1289, %v508
    %v1291 = vmul.f32 %v1289, %v509
    %v1292 = vadd.f32 %v1286, %v1290
    %v1293 = vadd.f32 %v1287, %v1291
    %s1294 = sld [smem:[#allocation10 + $0x13]]
    %v1295 = vstv %s1294
    %v1296 = vmul.f32 %v1295, %v640
    %v1297 = vmul.f32 %v1295, %v641
    %v1298 = vadd.f32 %v1292, %v1296
    %v1299 = vadd.f32 %v1293, %v1297
    %s1300 = sld [smem:[#allocation10 + $0x14]]
    %v1301 = vstv %s1300
    %v1302 = vmul.f32 %v1301, %v772
    %v1303 = vmul.f32 %v1301, %v773
    %v1304 = vadd.f32 %v1298, %v1302
    %v1305 = vadd.f32 %v1299, %v1303
    %s1306 = sld [smem:[#allocation10 + $0x15]]
    %v1307 = vstv %s1306
    %v1308 = vmul.f32 %v1307, %v904
    %v1309 = vmul.f32 %v1307, %v905
    %v1310 = vadd.f32 %v1304, %v1308
    %v1311 = vadd.f32 %v1305, %v1309
    %s1312 = sld [smem:[#allocation10 + $0x16]]
    %v1313 = vstv %s1312
    %v1314 = vmul.f32 %v1313, %v1036
    %v1315 = vmul.f32 %v1313, %v1037
    %v1316 = vadd.f32 %v1310, %v1314
    %v1317 = vadd.f32 %v1311, %v1315
    %s1318 = sld [smem:[#allocation10 + $0x17]]
    %v1319 = vstv %s1318
    %v1320 = vmul.f32 %v1319, %v1168
    %v1321 = vmul.f32 %v1319, %v1169
    %v1322 = vadd.f32 %v1316, %v1320
    %v1323 = vadd.f32 %v1317, %v1321
    %v1324 = vmax.f32 %v1322, 0.0
    %v1325 = vmax.f32 %v1323, 0.0
    %s1326 = sld [smem:[#allocation11 + $0x3]]
    %v1327 = vstv %s1326
    %s1328 = sld [smem:[#allocation10 + $0x18]]
    %v1329 = vstv %s1328
    %v1330 = vmul.f32 %v1329, %v244
    %v1331 = vmul.f32 %v1329, %v245
    %v1332 = vadd.f32 %v1327, %v1330
    %v1333 = vadd.f32 %v1327, %v1331
    %s1334 = sld [smem:[#allocation10 + $0x19]]
    %v1335 = vstv %s1334
    %v1336 = vmul.f32 %v1335, %v376
    %v1337 = vmul.f32 %v1335, %v377
    %v1338 = vadd.f32 %v1332, %v1336
    %v1339 = vadd.f32 %v1333, %v1337
    %s1340 = sld [smem:[#allocation10 + $0x1a]]
    %v1341 = vstv %s1340
    %v1342 = vmul.f32 %v1341, %v508
    %v1343 = vmul.f32 %v1341, %v509
    %v1344 = vadd.f32 %v1338, %v1342
    %v1345 = vadd.f32 %v1339, %v1343
    %s1346 = sld [smem:[#allocation10 + $0x1b]]
    %v1347 = vstv %s1346
    %v1348 = vmul.f32 %v1347, %v640
    %v1349 = vmul.f32 %v1347, %v641
    %v1350 = vadd.f32 %v1344, %v1348
    %v1351 = vadd.f32 %v1345, %v1349
    %s1352 = sld [smem:[#allocation10 + $0x1c]]
    %v1353 = vstv %s1352
    %v1354 = vmul.f32 %v1353, %v772
    %v1355 = vmul.f32 %v1353, %v773
    %v1356 = vadd.f32 %v1350, %v1354
    %v1357 = vadd.f32 %v1351, %v1355
    %s1358 = sld [smem:[#allocation10 + $0x1d]]
    %v1359 = vstv %s1358
    %v1360 = vmul.f32 %v1359, %v904
    %v1361 = vmul.f32 %v1359, %v905
    %v1362 = vadd.f32 %v1356, %v1360
    %v1363 = vadd.f32 %v1357, %v1361
    %s1364 = sld [smem:[#allocation10 + $0x1e]]
    %v1365 = vstv %s1364
    %v1366 = vmul.f32 %v1365, %v1036
    %v1367 = vmul.f32 %v1365, %v1037
    %v1368 = vadd.f32 %v1362, %v1366
    %v1369 = vadd.f32 %v1363, %v1367
    %s1370 = sld [smem:[#allocation10 + $0x1f]]
    %v1371 = vstv %s1370
    %v1372 = vmul.f32 %v1371, %v1168
    %v1373 = vmul.f32 %v1371, %v1169
    %v1374 = vadd.f32 %v1368, %v1372
    %v1375 = vadd.f32 %v1369, %v1373
    %v1376 = vmax.f32 %v1374, 0.0
    %v1377 = vmax.f32 %v1375, 0.0
    %s1378 = sld [smem:[#allocation11 + $0x4]]
    %v1379 = vstv %s1378
    %s1380 = sld [smem:[#allocation10 + $0x20]]
    %v1381 = vstv %s1380
    %v1382 = vmul.f32 %v1381, %v244
    %v1383 = vmul.f32 %v1381, %v245
    %v1384 = vadd.f32 %v1379, %v1382
    %v1385 = vadd.f32 %v1379, %v1383
    %s1386 = sld [smem:[#allocation10 + $0x21]]
    %v1387 = vstv %s1386
    %v1388 = vmul.f32 %v1387, %v376
    %v1389 = vmul.f32 %v1387, %v377
    %v1390 = vadd.f32 %v1384, %v1388
    %v1391 = vadd.f32 %v1385, %v1389
    %s1392 = sld [smem:[#allocation10 + $0x22]]
    %v1393 = vstv %s1392
    %v1394 = vmul.f32 %v1393, %v508
    %v1395 = vmul.f32 %v1393, %v509
    %v1396 = vadd.f32 %v1390, %v1394
    %v1397 = vadd.f32 %v1391, %v1395
    %s1398 = sld [smem:[#allocation10 + $0x23]]
    %v1399 = vstv %s1398
    %v1400 = vmul.f32 %v1399, %v640
    %v1401 = vmul.f32 %v1399, %v641
    %v1402 = vadd.f32 %v1396, %v1400
    %v1403 = vadd.f32 %v1397, %v1401
    %s1404 = sld [smem:[#allocation10 + $0x24]]
    %v1405 = vstv %s1404
    %v1406 = vmul.f32 %v1405, %v772
    %v1407 = vmul.f32 %v1405, %v773
    %v1408 = vadd.f32 %v1402, %v1406
    %v1409 = vadd.f32 %v1403, %v1407
    %s1410 = sld [smem:[#allocation10 + $0x25]]
    %v1411 = vstv %s1410
    %v1412 = vmul.f32 %v1411, %v904
    %v1413 = vmul.f32 %v1411, %v905
    %v1414 = vadd.f32 %v1408, %v1412
    %v1415 = vadd.f32 %v1409, %v1413
    %s1416 = sld [smem:[#allocation10 + $0x26]]
    %v1417 = vstv %s1416
    %v1418 = vmul.f32 %v1417, %v1036
    %v1419 = vmul.f32 %v1417, %v1037
    %v1420 = vadd.f32 %v1414, %v1418
    %v1421 = vadd.f32 %v1415, %v1419
    %s1422 = sld [smem:[#allocation10 + $0x27]]
    %v1423 = vstv %s1422
    %v1424 = vmul.f32 %v1423, %v1168
    %v1425 = vmul.f32 %v1423, %v1169
    %v1426 = vadd.f32 %v1420, %v1424
    %v1427 = vadd.f32 %v1421, %v1425
    %v1428 = vmax.f32 %v1426, 0.0
    %v1429 = vmax.f32 %v1427, 0.0
    %s1430 = sld [smem:[#allocation11 + $0x5]]
    %v1431 = vstv %s1430
    %s1432 = sld [smem:[#allocation10 + $0x28]]
    %v1433 = vstv %s1432
    %v1434 = vmul.f32 %v1433, %v244
    %v1435 = vmul.f32 %v1433, %v245
    %v1436 = vadd.f32 %v1431, %v1434
    %v1437 = vadd.f32 %v1431, %v1435
    %s1438 = sld [smem:[#allocation10 + $0x29]]
    %v1439 = vstv %s1438
    %v1440 = vmul.f32 %v1439, %v376
    %v1441 = vmul.f32 %v1439, %v377
    %v1442 = vadd.f32 %v1436, %v1440
    %v1443 = vadd.f32 %v1437, %v1441
    %s1444 = sld [smem:[#allocation10 + $0x2a]]
    %v1445 = vstv %s1444
    %v1446 = vmul.f32 %v1445, %v508
    %v1447 = vmul.f32 %v1445, %v509
    %v1448 = vadd.f32 %v1442, %v1446
    %v1449 = vadd.f32 %v1443, %v1447
    %s1450 = sld [smem:[#allocation10 + $0x2b]]
    %v1451 = vstv %s1450
    %v1452 = vmul.f32 %v1451, %v640
    %v1453 = vmul.f32 %v1451, %v641
    %v1454 = vadd.f32 %v1448, %v1452
    %v1455 = vadd.f32 %v1449, %v1453
    %s1456 = sld [smem:[#allocation10 + $0x2c]]
    %v1457 = vstv %s1456
    %v1458 = vmul.f32 %v1457, %v772
    %v1459 = vmul.f32 %v1457, %v773
    %v1460 = vadd.f32 %v1454, %v1458
    %v1461 = vadd.f32 %v1455, %v1459
    %s1462 = sld [smem:[#allocation10 + $0x2d]]
    %v1463 = vstv %s1462
    %v1464 = vmul.f32 %v1463, %v904
    %v1465 = vmul.f32 %v1463, %v905
    %v1466 = vadd.f32 %v1460, %v1464
    %v1467 = vadd.f32 %v1461, %v1465
    %s1468 = sld [smem:[#allocation10 + $0x2e]]
    %v1469 = vstv %s1468
    %v1470 = vmul.f32 %v1469, %v1036
    %v1471 = vmul.f32 %v1469, %v1037
    %v1472 = vadd.f32 %v1466, %v1470
    %v1473 = vadd.f32 %v1467, %v1471
    %s1474 = sld [smem:[#allocation10 + $0x2f]]
    %v1475 = vstv %s1474
    %v1476 = vmul.f32 %v1475, %v1168
    %v1477 = vmul.f32 %v1475, %v1169
    %v1478 = vadd.f32 %v1472, %v1476
    %v1479 = vadd.f32 %v1473, %v1477
    %v1480 = vmax.f32 %v1478, 0.0
    %v1481 = vmax.f32 %v1479, 0.0
    %s1482 = sld [smem:[#allocation11 + $0x6]]
    %v1483 = vstv %s1482
    %s1484 = sld [smem:[#allocation10 + $0x30]]
    %v1485 = vstv %s1484
    %v1486 = vmul.f32 %v1485, %v244
    %v1487 = vmul.f32 %v1485, %v245
    %v1488 = vadd.f32 %v1483, %v1486
    %v1489 = vadd.f32 %v1483, %v1487
    %s1490 = sld [smem:[#allocation10 + $0x31]]
    %v1491 = vstv %s1490
    %v1492 = vmul.f32 %v1491, %v376
    %v1493 = vmul.f32 %v1491, %v377
    %v1494 = vadd.f32 %v1488, %v1492
    %v1495 = vadd.f32 %v1489, %v1493
    %s1496 = sld [smem:[#allocation10 + $0x32]]
    %v1497 = vstv %s1496
    %v1498 = vmul.f32 %v1497, %v508
    %v1499 = vmul.f32 %v1497, %v509
    %v1500 = vadd.f32 %v1494, %v1498
    %v1501 = vadd.f32 %v1495, %v1499
    %s1502 = sld [smem:[#allocation10 + $0x33]]
    %v1503 = vstv %s1502
    %v1504 = vmul.f32 %v1503, %v640
    %v1505 = vmul.f32 %v1503, %v641
    %v1506 = vadd.f32 %v1500, %v1504
    %v1507 = vadd.f32 %v1501, %v1505
    %s1508 = sld [smem:[#allocation10 + $0x34]]
    %v1509 = vstv %s1508
    %v1510 = vmul.f32 %v1509, %v772
    %v1511 = vmul.f32 %v1509, %v773
    %v1512 = vadd.f32 %v1506, %v1510
    %v1513 = vadd.f32 %v1507, %v1511
    %s1514 = sld [smem:[#allocation10 + $0x35]]
    %v1515 = vstv %s1514
    %v1516 = vmul.f32 %v1515, %v904
    %v1517 = vmul.f32 %v1515, %v905
    %v1518 = vadd.f32 %v1512, %v1516
    %v1519 = vadd.f32 %v1513, %v1517
    %s1520 = sld [smem:[#allocation10 + $0x36]]
    %v1521 = vstv %s1520
    %v1522 = vmul.f32 %v1521, %v1036
    %v1523 = vmul.f32 %v1521, %v1037
    %v1524 = vadd.f32 %v1518, %v1522
    %v1525 = vadd.f32 %v1519, %v1523
    %s1526 = sld [smem:[#allocation10 + $0x37]]
    %v1527 = vstv %s1526
    %v1528 = vmul.f32 %v1527, %v1168
    %v1529 = vmul.f32 %v1527, %v1169
    %v1530 = vadd.f32 %v1524, %v1528
    %v1531 = vadd.f32 %v1525, %v1529
    %v1532 = vmax.f32 %v1530, 0.0
    %v1533 = vmax.f32 %v1531, 0.0
    %s1534 = sld [smem:[#allocation11 + $0x7]]
    %v1535 = vstv %s1534
    %s1536 = sld [smem:[#allocation10 + $0x38]]
    %v1537 = vstv %s1536
    %v1538 = vmul.f32 %v1537, %v244
    %v1539 = vmul.f32 %v1537, %v245
    %v1540 = vadd.f32 %v1535, %v1538
    %v1541 = vadd.f32 %v1535, %v1539
    %s1542 = sld [smem:[#allocation10 + $0x39]]
    %v1543 = vstv %s1542
    %v1544 = vmul.f32 %v1543, %v376
    %v1545 = vmul.f32 %v1543, %v377
    %v1546 = vadd.f32 %v1540, %v1544
    %v1547 = vadd.f32 %v1541, %v1545
    %s1548 = sld [smem:[#allocation10 + $0x3a]]
    %v1549 = vstv %s1548
    %v1550 = vmul.f32 %v1549, %v508
    %v1551 = vmul.f32 %v1549, %v509
    %v1552 = vadd.f32 %v1546, %v1550
    %v1553 = vadd.f32 %v1547, %v1551
    %s1554 = sld [smem:[#allocation10 + $0x3b]]
    %v1555 = vstv %s1554
    %v1556 = vmul.f32 %v1555, %v640
    %v1557 = vmul.f32 %v1555, %v641
    %v1558 = vadd.f32 %v1552, %v1556
    %v1559 = vadd.f32 %v1553, %v1557
    %s1560 = sld [smem:[#allocation10 + $0x3c]]
    %v1561 = vstv %s1560
    %v1562 = vmul.f32 %v1561, %v772
    %v1563 = vmul.f32 %v1561, %v773
    %v1564 = vadd.f32 %v1558, %v1562
    %v1565 = vadd.f32 %v1559, %v1563
    %s1566 = sld [smem:[#allocation10 + $0x3d]]
    %v1567 = vstv %s1566
    %v1568 = vmul.f32 %v1567, %v904
    %v1569 = vmul.f32 %v1567, %v905
    %v1570 = vadd.f32 %v1564, %v1568
    %v1571 = vadd.f32 %v1565, %v1569
    %s1572 = sld [smem:[#allocation10 + $0x3e]]
    %v1573 = vstv %s1572
    %v1574 = vmul.f32 %v1573, %v1036
    %v1575 = vmul.f32 %v1573, %v1037
    %v1576 = vadd.f32 %v1570, %v1574
    %v1577 = vadd.f32 %v1571, %v1575
    %s1578 = sld [smem:[#allocation10 + $0x3f]]
    %v1579 = vstv %s1578
    %v1580 = vmul.f32 %v1579, %v1168
    %v1581 = vmul.f32 %v1579, %v1169
    %v1582 = vadd.f32 %v1576, %v1580
    %v1583 = vadd.f32 %v1577, %v1581
    %v1584 = vmax.f32 %v1582, 0.0
    %v1585 = vmax.f32 %v1583, 0.0
    %s1586 = sld [smem:[#allocation2]]
    %v1587 = vstv %s1586
    %s1588 = sld [smem:[#allocation13]]
    %v1589 = vstv %s1588
    %v1590 = vmul.f32 %v1589, %v1220
    %v1591 = vmul.f32 %v1589, %v1221
    %v1592 = vadd.f32 %v1587, %v1590
    %v1593 = vadd.f32 %v1587, %v1591
    %s1594 = sld [smem:[#allocation13 + $0x1]]
    %v1595 = vstv %s1594
    %v1596 = vmul.f32 %v1595, %v1272
    %v1597 = vmul.f32 %v1595, %v1273
    %v1598 = vadd.f32 %v1592, %v1596
    %v1599 = vadd.f32 %v1593, %v1597
    %s1600 = sld [smem:[#allocation13 + $0x2]]
    %v1601 = vstv %s1600
    %v1602 = vmul.f32 %v1601, %v1324
    %v1603 = vmul.f32 %v1601, %v1325
    %v1604 = vadd.f32 %v1598, %v1602
    %v1605 = vadd.f32 %v1599, %v1603
    %s1606 = sld [smem:[#allocation13 + $0x3]]
    %v1607 = vstv %s1606
    %v1608 = vmul.f32 %v1607, %v1376
    %v1609 = vmul.f32 %v1607, %v1377
    %v1610 = vadd.f32 %v1604, %v1608
    %v1611 = vadd.f32 %v1605, %v1609
    %s1612 = sld [smem:[#allocation13 + $0x4]]
    %v1613 = vstv %s1612
    %v1614 = vmul.f32 %v1613, %v1428
    %v1615 = vmul.f32 %v1613, %v1429
    %v1616 = vadd.f32 %v1610, %v1614
    %v1617 = vadd.f32 %v1611, %v1615
    %s1618 = sld [smem:[#allocation13 + $0x5]]
    %v1619 = vstv %s1618
    %v1620 = vmul.f32 %v1619, %v1480
    %v1621 = vmul.f32 %v1619, %v1481
    %v1622 = vadd.f32 %v1616, %v1620
    %v1623 = vadd.f32 %v1617, %v1621
    %s1624 = sld [smem:[#allocation13 + $0x6]]
    %v1625 = vstv %s1624
    %v1626 = vmul.f32 %v1625, %v1532
    %v1627 = vmul.f32 %v1625, %v1533
    %v1628 = vadd.f32 %v1622, %v1626
    %v1629 = vadd.f32 %v1623, %v1627
    %s1630 = sld [smem:[#allocation13 + $0x7]]
    %v1631 = vstv %s1630
    %v1632 = vmul.f32 %v1631, %v1584
    %v1633 = vmul.f32 %v1631, %v1585
    %v1634 = vadd.f32 %v1628, %v1632
    %v1635 = vadd.f32 %v1629, %v1633
    %1636 = vst [vmem:[#allocation14] sm:$0xff] %v1634
    %1637 = vst [vmem:[#allocation14 + $0x8] sm:$0x3f] %v1635
    // Predicated region
    $region54: #{tpu_custom_call.1} parent=1 // pred_check
      _
    $region55: #{tpu_custom_call.1} parent=1 // pred_check_branch
      %1639 = sbr.rel (0) target = $region57
    $region56: #{tpu_custom_call.1} parent=1 // pred_region
      %s1641 = ssub.s32 256, 256
      %1642 = vsyncadd [#allocation5], %s1641
      %s1643 = sshll.u32 [#allocation14], 4
      %s1644 = int_to_ptr.vmem [resolvable:$true] %s1643
      %1649 = dma.vmem_to_hbm [thread:$0]  %s1644, 256, %s7, [#allocation5], 128, 128, 8
    $region57: #{tpu_custom_call.1} parent=1 // pred_fallthru
      _
    // Predicated region
    $region58: #{tpu_custom_call.1} parent=1 // pred_check
      _
    $region59: #{tpu_custom_call.1} parent=1 // pred_check_branch
      %1651 = sbr.rel (0) target = $region61
    $region60: #{tpu_custom_call.1} parent=1 // pred_region
      %1652 = dma.done [#allocation5], 256
    $region61: #{tpu_custom_call.1} parent=1 // pred_fallthru
      _
    %1653 = vsyncpa [#allocation4], 1
    %1654 = vsyncpa [#allocation5], 1
    %1655 = vsyncpa [#allocation6], 1
    %1656 = vsyncpa [#allocation9], 1
    %1657 = vsyncpa [#allocation12], 1

</llo_original>
